<compile_context>
chip_gen: v5e
topology: v5e:2x2
jax: 0.10.0
libtpu: 0.0.40
codegen_flags: <defaults>
</compile_context>

<pallas_src>
import math
import functools

import jax
import jax.numpy as jnp
import numpy as np
from jax.experimental import pallas as pl
from jax.experimental.pallas import tpu as pltpu

_EPS = 1e-5
_INV_SQRT2 = 1.0 / math.sqrt(2.0)


def _cdiv(a, b):
    return -(-a // b)


def _gelu(y):
    # Exact (erf) GELU, matching torch.nn.GELU(approximate='none').
    return 0.5 * y * (1.0 + jax.lax.erf(y * _INV_SQRT2))


def _masked(y, t, *, rows, tm, g, cout):
    """Zero entries of a folded output tile that correspond to zero-padded rows.

    Folded entry (r, j) of tile t maps to flat output row (t*tm + r)*g + j // cout; it is padding iff that
    index >= rows.  Rewritten division-free:  j // cout < q  <=>  j < q * cout.
    """
    r = jax.lax.broadcasted_iota(jnp.int32, y.shape, 0)
    c = jax.lax.broadcasted_iota(jnp.int32, y.shape, 1)
    limit = (rows - (t * tm + r) * g) * cout
    return jnp.where(c < limit, y, 0.0)


def _downscale_stats_kernel(p_ref, gamma_ref, beta_ref, comb_ref, w_ref,
                            o_ref, osum_ref, osumsq_ref,
                            csum_ref, csumsq_ref, a_ref, b_ref,
                            *, rows, tm, g, cout, nl, nt, has_pad):
    """First Downscale1D layer, 2-phase grid = (phase, row_tile).

    Phase 0 streams folded patch tiles and accumulates per-column sum / sum-of-squares.
    Phase 1 finalizes the BN affine, streams the tiles again, does conv-as-matmul + GELU, writes the
    lane-dense output tile, and accumulates per-column stats of the output for the next layer's BN.

    p_ref:      (tm, W)     folded patch tile, W = g*K; column j -> input channel j % Cin
    gamma_ref:  (1, W)      BN weight per column;   beta_ref: (1, W) BN bias per column
    comb_ref:   (W, W)      comb[j, j'] = 1 iff columns j, j' belong to the same input channel
    w_ref:      (W, Wout)   block-diagonal conv weight, Wout = g*Cout
    o_ref:      (tm, Wout)  GELU(conv(BN(x))) tile (padded rows hold garbage; sliced off in the wrapper)
    osum/osumsq:(1, Wout)   per-column sum / sumsq of the output (padded rows excluded)
    scratch:    csum/csumsq/a/b, all (1, W) f32, persist across grid steps.
    """
    s = pl.program_id(0)   # 0: batch statistics, 1: normalize + conv + GELU (+ next-layer stats)
    t = pl.program_id(1)

    @pl.when((s == 0) & (t == 0))
    def _init():
        csum_ref[...] = jnp.zeros_like(csum_ref)
        csumsq_ref[...] = jnp.zeros_like(csumsq_ref)

    @pl.when(s == 0)
    def _accumulate():
        # Padded rows are zero, so they contribute nothing -> no per-tile masking in the stats phase.
        p = p_ref[...]
        csum_ref[...] += jnp.sum(p, axis=0, keepdims=True)
        csumsq_ref[...] += jnp.sum(p * p, axis=0, keepdims=True)

    @pl.when((s == 1) & (t == 0))
    def _finalize_stats():
        c = comb_ref[...]
        ssum = jnp.dot(csum_ref[...], c, preferred_element_type=jnp.float32)   # per-channel totals
        ssq = jnp.dot(csumsq_ref[...], c, preferred_element_type=jnp.float32)
        inv_n = 1.0 / float(nl)
        mean = ssum * inv_n
        # TODO(synk): one-pass E[x^2]-E[x]^2 can cancel when |mean| >> std; fine for BN-scale activations.
        var = jnp.maximum(ssq * inv_n - mean * mean, 0.0)
        a = gamma_ref[...] * jax.lax.rsqrt(var + _EPS)
        a_ref[...] = a
        b_ref[...] = beta_ref[...] - mean * a
        osum_ref[...] = jnp.zeros_like(osum_ref)
        osumsq_ref[...] = jnp.zeros_like(osumsq_ref)

    @pl.when(s == 1)
    def _apply():
        # BatchNorm affine (Dropout(p=0) == identity), conv-as-matmul on the MXU, exact GELU.
        z = p_ref[...] * a_ref[...] + b_ref[...]
        y = _gelu(jnp.dot(z, w_ref[...], preferred_element_type=jnp.float32))
        o_ref[...] = y

        def _acc(v):
            osum_ref[...] += jnp.sum(v, axis=0, keepdims=True)
            osumsq_ref[...] += jnp.sum(v * v, axis=0, keepdims=True)

        if has_pad:
            @pl.when(t != nt - 1)
            def _acc_full():
                _acc(y)

            @pl.when(t == nt - 1)
            def _acc_masked():
                _acc(_masked(y, t, rows=rows, tm=tm, g=g, cout=cout))
        else:
            _acc(y)


def _downscale_apply_kernel(p_ref, w_ref, bias_ref, *out_refs,
                            rows, tm, g, cout, nt, has_pad, emit_stats):
    """Downscale1D layers after the first: single-phase streaming apply with precomputed BN stats.

    The BN affine is already folded into w_ref / bias_ref by the wrapper, so the kernel is just
    o = GELU(p @ W_blockdiag + bias); non-final layers also accumulate the next layer's column stats.
    """
    if emit_stats:
        o_ref, osum_ref, osumsq_ref = out_refs
    else:
        (o_ref,) = out_refs
    t = pl.program_id(0)

    if emit_stats:
        @pl.when(t == 0)
        def _init():
            osum_ref[...] = jnp.zeros_like(osum_ref)
            osumsq_ref[...] = jnp.zeros_like(osumsq_ref)

    y = jnp.dot(p_ref[...], w_ref[...], preferred_element_type=jnp.float32) + bias_ref[...]
    y = _gelu(y)
    o_ref[...] = y

    if emit_stats:
        def _acc(v):
            osum_ref[...] += jnp.sum(v, axis=0, keepdims=True)
            osumsq_ref[...] += jnp.sum(v * v, axis=0, keepdims=True)

        if has_pad:
            @pl.when(t != nt - 1)
            def _acc_full():
                _acc(y)

            @pl.when(t == nt - 1)
            def _acc_masked():
                _acc(_masked(y, t, rows=rows, tm=tm, g=g, cout=cout))
        else:
            _acc(y)


def _plan(rows, k, cout, tm_target):
    """Fold factor, lane widths, folded row-tile size and padded folded row count."""
    g = max(1, 128 // k)
    w_in, w_out = g * k, g * cout
    f_needed = _cdiv(rows, g)
    # VMEM budget uses 128-lane-padded widths (exact after folding); 24 MiB double-buffer budget is safe
    # for v7x (64 MiB VMEM, 32 MiB scoped default).  Resident weights/comb are ~128 KiB and ignored.
    pad128 = lambda n: _cdiv(n, 128) * 128
    bytes_per_frow = (pad128(w_in) + pad128(w_out)) * 4
    budget = 24 * 1024 * 1024
    cap = max(8, (budget // (2 * bytes_per_frow)) // 8 * 8)
    tm = max(8, (min(tm_target, cap) // 8) * 8)
    if f_needed <= tm:
        tm = f_needed                      # single tile: block == full (padded) array dims
        f_pad = f_needed
    else:
        f_pad = _cdiv(f_needed, tm) * tm   # padding < tm folded rows -> confined to the last tile
    nt = _cdiv(f_pad, tm)
    return g, w_in, w_out, tm, f_pad, nt


def _fold_patches(x_nlc, factor, g, f_pad):
    """im2col (pure reshape: stride == kernel) + zero-pad + fold g rows into the lane dimension."""
    n, l, cin = x_nlc.shape
    t = l // factor
    rows = n * t
    k = factor * cin
    p = x_nlc.reshape(rows, k).astype(jnp.float32)
    rows_pad = f_pad * g
    if rows_pad != rows:
        p = jnp.pad(p, ((0, rows_pad - rows), (0, 0)))
    return p.reshape(f_pad, g * k), rows, t


def _unfold_output(o, rows, g, cout, n, t):
    rows_pad = o.shape[0] * g
    y = o.reshape(rows_pad, cout)
    if rows_pad != rows:
        y = y[:rows]
    return y.reshape(n, t, cout)


def _blockdiag(w_kc, g):
    # Block-diagonal (g*K, g*Cout) weight: block (i, i) = w_kc.
    return jnp.kron(jnp.eye(g, dtype=jnp.float32), w_kc)


def downscale_first(x_nlc, gamma, beta, w_oik, factor, *, tm_target=512):
    """First layer: BN stats computed in-kernel (2-phase).  Returns (y_nlc, (osum, osumsq, count))."""
    n, l, cin = x_nlc.shape
    cout = w_oik.shape[0]
    assert l % factor == 0, "length must be divisible by the downscale factor"
    k = factor * cin
    rows = n * (l // factor)
    g, w_in, w_out, tm, f_pad, nt = _plan(rows, k, cout, tm_target)
    has_pad = (f_pad * g != rows)

    patches, rows, t_out = _fold_patches(x_nlc, factor, g, f_pad)
    w2 = jnp.transpose(w_oik, (2, 1, 0)).reshape(k, cout).astype(jnp.float32)   # row index kk*cin + c
    wbd = _blockdiag(w2, g)                                                     # (w_in, w_out)
    gamma_w = jnp.tile(gamma.astype(jnp.float32), w_in // cin).reshape(1, w_in)
    beta_w = jnp.tile(beta.astype(jnp.float32), w_in // cin).reshape(1, w_in)
    ch = jnp.arange(w_in, dtype=jnp.int32) % cin
    comb = (ch[:, None] == ch[None, :]).astype(jnp.float32)                     # (w_in, w_in)

    kern = functools.partial(_downscale_stats_kernel, rows=rows, tm=tm, g=g, cout=cout,
                             nl=rows * factor, nt=nt, has_pad=has_pad)
    o, osum, osumsq = pl.pallas_call(
        kern,
        out_shape=(jax.ShapeDtypeStruct((f_pad, w_out), jnp.float32),
                   jax.ShapeDtypeStruct((1, w_out), jnp.float32),
                   jax.ShapeDtypeStruct((1, w_out), jnp.float32)),
        grid_spec=pltpu.PrefetchScalarGridSpec(
            num_scalar_prefetch=0,
            grid=(2, nt),   # (phase, row tile): phase 0 = stats reduction, phase 1 = streaming apply
            in_specs=[
                pl.BlockSpec((tm, w_in), lambda s, t: (t, 0)),      # folded patch tiles (both phases)
                pl.BlockSpec((1, w_in), lambda s, t: (0, 0)),       # gamma (resident)
                pl.BlockSpec((1, w_in), lambda s, t: (0, 0)),       # beta (resident)
                pl.BlockSpec((w_in, w_in), lambda s, t: (0, 0)),    # channel-combine matrix (resident)
                pl.BlockSpec((w_in, w_out), lambda s, t: (0, 0)),   # block-diag conv weight (resident)
            ],
            out_specs=[
                # Block 0 stays resident through phase 0 (never written there -> no garbage writeback),
                # then phase 1 walks the row tiles.
                pl.BlockSpec((tm, w_out), lambda s, t: (t * s, 0)),
                pl.BlockSpec((1, w_out), lambda s, t: (0, 0)),      # next-layer column sums (accumulator)
                pl.BlockSpec((1, w_out), lambda s, t: (0, 0)),      # next-layer column sumsq (accumulator)
            ],
            scratch_shapes=[pltpu.VMEM((1, w_in), jnp.float32) for _ in range(4)],
        ),
        compiler_params=pltpu.CompilerParams(
            # Both axes carry accumulators (input stats across phase-0 tiles, output stats across phase-1
            # tiles), so both must stay "arbitrary".
            dimension_semantics=("arbitrary", "arbitrary"),
            vmem_limit_bytes=48 * 1024 * 1024,
        ),
    )(patches, gamma_w, beta_w, comb, wbd)

    y = _unfold_output(o, rows, g, cout, n, t_out)
    return y, (osum, osumsq, rows)


def downscale_precomputed(x_nlc, gamma, beta, w_oik, factor, prev_stats, *,
                          tm_target=512, emit_stats=True):
    """Layers after the first: BN stats come from the previous layer's fused output stats; the BN affine
    is folded into the conv weight/bias in the wrapper, so the kernel is a single streaming pass."""
    n, l, cin = x_nlc.shape
    cout = w_oik.shape[0]
    assert l % factor == 0, "length must be divisible by the downscale factor"
    k = factor * cin
    rows = n * (l // factor)
    g, w_in, w_out, tm, f_pad, nt = _plan(rows, k, cout, tm_target)
    has_pad = (f_pad * g != rows)

    # Per-channel BN stats of this layer's input from the previous layer's per-column output sums.
    osum_prev, osumsq_prev, count = prev_stats
    csum = jnp.sum(osum_prev.reshape(-1, cin), axis=0)      # (cin,)
    csq = jnp.sum(osumsq_prev.reshape(-1, cin), axis=0)
    inv_n = 1.0 / float(count)
    mean = csum * inv_n
    var = jnp.maximum(csq * inv_n - mean * mean, 0.0)
    a = gamma.astype(jnp.float32) * jax.lax.rsqrt(var + _EPS)
    b = beta.astype(jnp.float32) - mean * a

    # Fold the BN affine into the conv weight / bias (tiny (K, Cout) wrapper-side ops, not activation-sized).
    w2 = jnp.transpose(w_oik, (2, 1, 0)).reshape(k, cout).astype(jnp.float32)
    w_eff = jnp.tile(a, factor)[:, None] * w2               # (k, cout)
    bias_eff = jnp.tile(b, factor) @ w2                     # (cout,)
    wbd = _blockdiag(w_eff, g)                               # (w_in, w_out)
    bias_w = jnp.tile(bias_eff, g).reshape(1, w_out)

    patches, rows, t_out = _fold_patches(x_nlc, factor, g, f_pad)

    if emit_stats:
        out_shape = (jax.ShapeDtypeStruct((f_pad, w_out), jnp.float32),
                     jax.ShapeDtypeStruct((1, w_out), jnp.float32),
                     jax.ShapeDtypeStruct((1, w_out), jnp.float32))
        out_specs = [pl.BlockSpec((tm, w_out), lambda t: (t, 0)),
                     pl.BlockSpec((1, w_out), lambda t: (0, 0)),
                     pl.BlockSpec((1, w_out), lambda t: (0, 0))]
        semantics = ("arbitrary",)       # output-stats accumulator carried across row tiles
    else:
        out_shape = jax.ShapeDtypeStruct((f_pad, w_out), jnp.float32)
        out_specs = pl.BlockSpec((tm, w_out), lambda t: (t, 0))
        semantics = ("parallel",)        # no carry -> v7x megacore can split the row tiles

    kern = functools.partial(_downscale_apply_kernel, rows=rows, tm=tm, g=g, cout=cout,
                             nt=nt, has_pad=has_pad, emit_stats=emit_stats)
    res = pl.pallas_call(
        kern,
        out_shape=out_shape,
        grid_spec=pltpu.PrefetchScalarGridSpec(
            num_scalar_prefetch=0,
            grid=(nt,),
            in_specs=[
                pl.BlockSpec((tm, w_in), lambda t: (t, 0)),         # folded patch tiles
                pl.BlockSpec((w_in, w_out), lambda t: (0, 0)),      # BN-folded block-diag weight (resident)
                pl.BlockSpec((1, w_out), lambda t: (0, 0)),         # BN-folded bias (resident)
            ],
            out_specs=out_specs,
        ),
        compiler_params=pltpu.CompilerParams(
            dimension_semantics=semantics,
            vmem_limit_bytes=48 * 1024 * 1024,
        ),
    )(patches, wbd, bias_w)

    if emit_stats:
        o, osum, osumsq = res
        stats = (osum, osumsq, rows)
    else:
        o, stats = res, None
    y = _unfold_output(o, rows, g, cout, n, t_out)
    return y, stats


def bottleneck_with_intermediates(x_ncl, params, factors, *, tm_target=512):
    """params: list of (gamma, beta, conv_weight[Cout, Cin, factor]) per layer.  x_ncl: (N, C, L).

    Returns (last_output_ncl, [intermediate_ncl, ...]) matching the PyTorch module's forward.
    """
    # TODO(synk): training-mode dropout with p > 0 (random mask) not implemented; p = 0 is the identity.
    x = jnp.transpose(x_ncl, (0, 2, 1))      # single NCL -> NLC transpose at the entrance
    outs = []
    stats = None
    n_layers = len(params)
    for i, ((gamma, beta, w), f) in enumerate(zip(params, factors)):
        if i == 0:
            x, stats = downscale_first(x, gamma, beta, w, f, tm_target=tm_target)
        else:
            x, stats = downscale_precomputed(x, gamma, beta, w, f, stats, tm_target=tm_target,
                                             emit_stats=(i + 1 < n_layers))
        outs.append(x)
    intermediates = [jnp.transpose(o, (0, 2, 1)) for o in outs]   # back to PyTorch NCL once, at the end
    return intermediates[-1], intermediates


def _reference(x_ncl, params, factors):
    """Pure-JAX reference matching PyTorch training-mode forward semantics."""
    x = x_ncl
    outs = []
    for (gamma, beta, w), f in zip(params, factors):
        mean = jnp.mean(x, axis=(0, 2), keepdims=True)
        var = jnp.mean((x - mean) ** 2, axis=(0, 2), keepdims=True)
        xn = (x - mean) / jnp.sqrt(var + _EPS)
        xn = xn * gamma[None, :, None] + beta[None, :, None]
        y = jax.lax.conv_general_dilated(
            xn, w, window_strides=(f,), padding="VALID",
            dimension_numbers=("NCH", "OIH", "NCH"))
        x = jax.nn.gelu(y, approximate=False)
        outs.append(x)
    return x, outs


def _make_inputs(key, channels, factors, n, l):
    kx, key = jax.random.split(key)
    x = jax.random.normal(kx, (n, channels[0], l), dtype=jnp.float32)   # PyTorch NCL input
    params = []
    for i in range(len(channels) - 1):
        kg, kb, kw, key = jax.random.split(key, 4)
        cin, cout, f = channels[i], channels[i + 1], factors[i]
        gamma = 1.0 + 0.1 * jax.random.normal(kg, (cin,), dtype=jnp.float32)
        beta = 0.1 * jax.random.normal(kb, (cin,), dtype=jnp.float32)
        w = jax.random.normal(kw, (cout, cin, f), dtype=jnp.float32) / math.sqrt(cin * f)
        params.append((gamma, beta, w))
    return x, params


def _check(x, params, factors, tm_target):
    fwd = jax.jit(functools.partial(bottleneck_with_intermediates,
                                    factors=tuple(factors), tm_target=tm_target))
    out, inter = fwd(x, params)
    out = jax.block_until_ready(out)
    inter = [jax.block_until_ready(t) for t in inter]
    ref_out, ref_inter = _reference(x, params, factors)
    np.testing.assert_allclose(np.asarray(out), np.asarray(ref_out), rtol=2e-5, atol=2e-5)
    for got, want in zip(inter, ref_inter):
        np.testing.assert_allclose(np.asarray(got), np.asarray(want), rtol=2e-5, atol=2e-5)


if __name__ == "__main__":
    # Small shapes consistent with the module: channels=[4, 8, 16], factors=[2, 2], dropout=0.0
    channels = [4, 8, 16]
    factors = [2, 2]

    key = jax.random.PRNGKey(0)
    k1, k2, k3 = jax.random.split(key, 3)

    # Case 1: rows divisible by the fold factor -> exact lane-dense fold, single tile per layer.
    x1, p1 = _make_inputs(k1, channels, factors, n=2, l=16)
    _check(x1, p1, factors, tm_target=512)

    # Case 2: rows NOT divisible by the fold factor -> zero-padding + last-tile stats masking.
    x2, p2 = _make_inputs(k2, channels, factors, n=2, l=24)
    _check(x2, p2, factors, tm_target=512)

    # Case 3: force tiny folded row tiles -> multi-tile 2-phase grid, fused stats, padded last tile.
    x3, p3 = _make_inputs(k3, channels, factors, n=2, l=520)
    _check(x3, p3, factors, tm_target=8)

    print("KERNEL_OK")
</pallas_src>

<mosaic_0001>
module attributes {stable_mosaic.version = 11 : i64} {
  func.func @_downscale_stats_kernel(%arg0: i32, %arg1: i32, %arg2: memref<1x128xf32, #tpu.memory_space<vmem>>, %arg3: memref<1x128xf32, #tpu.memory_space<vmem>>, %arg4: memref<1x128xf32, #tpu.memory_space<vmem>>, %arg5: memref<128x128xf32, #tpu.memory_space<vmem>>, %arg6: memref<128x128xf32, #tpu.memory_space<vmem>>, %arg7: memref<1x128xf32, #tpu.memory_space<vmem>>, %arg8: memref<1x128xf32, #tpu.memory_space<vmem>>, %arg9: memref<1x128xf32, #tpu.memory_space<vmem>>, %arg10: memref<1x128xf32, #tpu.memory_space<vmem>>, %arg11: memref<1x128xf32, #tpu.memory_space<vmem>>, %arg12: memref<1x128xf32, #tpu.memory_space<vmem>>, %arg13: memref<1x128xf32, #tpu.memory_space<vmem>>) attributes {dimension_semantics = [#tpu.dimension_semantics<arbitrary>, #tpu.dimension_semantics<arbitrary>], iteration_bounds = array<i64: 2, 1>, scalar_prefetch = 0 : i64, scratch_operands = 4 : i64, tpu.core_type = #tpu.core_type<tc>, window_params = [{transform_indices = @transform_0, window_bounds = array<i64: 1, 128>}, {pipeline_mode = #tpu.pipeline_mode<synchronous>, transform_indices = @transform_1, window_bounds = array<i64: 1, 128>}, {pipeline_mode = #tpu.pipeline_mode<synchronous>, transform_indices = @transform_2, window_bounds = array<i64: 1, 128>}, {pipeline_mode = #tpu.pipeline_mode<synchronous>, transform_indices = @transform_3, window_bounds = array<i64: 128, 128>}, {pipeline_mode = #tpu.pipeline_mode<synchronous>, transform_indices = @transform_4, window_bounds = array<i64: 128, 128>}, {transform_indices = @transform_5, window_bounds = array<i64: 1, 128>}, {pipeline_mode = #tpu.pipeline_mode<synchronous>, transform_indices = @transform_6, window_bounds = array<i64: 1, 128>}, {pipeline_mode = #tpu.pipeline_mode<synchronous>, transform_indices = @transform_7, window_bounds = array<i64: 1, 128>}]} {
    %c0_i32 = arith.constant 0 : i32
    %0 = arith.cmpi eq, %arg0, %c0_i32 : i32
    %c0_i32_0 = arith.constant 0 : i32
    %1 = arith.cmpi eq, %arg1, %c0_i32_0 : i32
    %2 = arith.andi %0, %1 : i1
    %3 = arith.extui %2 : i1 to i32
    %c0_i32_1 = arith.constant 0 : i32
    %4 = arith.cmpi ne, %3, %c0_i32_1 : i32
    scf.if %4 {
      %cst = arith.constant 0.000000e+00 : f32
      %16 = vector.broadcast %cst : f32 to vector<1x128xf32>
      %c0 = arith.constant 0 : index
      %c0_8 = arith.constant 0 : index
      %17 = vector.load %arg10[%c0, %c0_8] : memref<1x128xf32, #tpu.memory_space<vmem>>, vector<1x128xf32>
      tpu.vector_store %arg10[%c0, %c0_8], %16 {strides = array<i32>} : memref<1x128xf32, #tpu.memory_space<vmem>>, vector<1x128xf32>,
      %cst_9 = arith.constant 0.000000e+00 : f32
      %18 = vector.broadcast %cst_9 : f32 to vector<1x128xf32>
      %c0_10 = arith.constant 0 : index
      %c0_11 = arith.constant 0 : index
      %19 = vector.load %arg11[%c0_10, %c0_11] : memref<1x128xf32, #tpu.memory_space<vmem>>, vector<1x128xf32>
      tpu.vector_store %arg11[%c0_10, %c0_11], %18 {strides = array<i32>} : memref<1x128xf32, #tpu.memory_space<vmem>>, vector<1x128xf32>,
    } else {
    }
    %c0_i32_2 = arith.constant 0 : i32
    %5 = arith.cmpi eq, %arg0, %c0_i32_2 : i32
    %6 = arith.extui %5 : i1 to i32
    %c0_i32_3 = arith.constant 0 : i32
    %7 = arith.cmpi ne, %6, %c0_i32_3 : i32
    scf.if %7 {
      %c0 = arith.constant 0 : index
      %c0_8 = arith.constant 0 : index
      %16 = vector.load %arg2[%c0, %c0_8] : memref<1x128xf32, #tpu.memory_space<vmem>>, vector<1x128xf32>
      %c0_9 = arith.constant 0 : index
      %c0_10 = arith.constant 0 : index
      %17 = vector.load %arg10[%c0_9, %c0_10] : memref<1x128xf32, #tpu.memory_space<vmem>>, vector<1x128xf32>
      %cst = arith.constant dense<0.000000e+00> : vector<128xf32>
      %18 = vector.multi_reduction <add>, %16, %cst [0] : vector<1x128xf32> to vector<128xf32>
      %19 = vector.shape_cast %18 : vector<128xf32> to vector<1x128xf32>
      %20 = arith.addf %17, %19 : vector<1x128xf32>
      %c0_11 = arith.constant 0 : index
      %c0_12 = arith.constant 0 : index
      %21 = vector.load %arg10[%c0_11, %c0_12] : memref<1x128xf32, #tpu.memory_space<vmem>>, vector<1x128xf32>
      tpu.vector_store %arg10[%c0_11, %c0_12], %20 {strides = array<i32>} : memref<1x128xf32, #tpu.memory_space<vmem>>, vector<1x128xf32>,
      %c0_13 = arith.constant 0 : index
      %c0_14 = arith.constant 0 : index
      %22 = vector.load %arg11[%c0_13, %c0_14] : memref<1x128xf32, #tpu.memory_space<vmem>>, vector<1x128xf32>
      %23 = arith.mulf %16, %16 : vector<1x128xf32>
      %cst_15 = arith.constant dense<0.000000e+00> : vector<128xf32>
      %24 = vector.multi_reduction <add>, %23, %cst_15 [0] : vector<1x128xf32> to vector<128xf32>
      %25 = vector.shape_cast %24 : vector<128xf32> to vector<1x128xf32>
      %26 = arith.addf %22, %25 : vector<1x128xf32>
      %c0_16 = arith.constant 0 : index
      %c0_17 = arith.constant 0 : index
      %27 = vector.load %arg11[%c0_16, %c0_17] : memref<1x128xf32, #tpu.memory_space<vmem>>, vector<1x128xf32>
      tpu.vector_store %arg11[%c0_16, %c0_17], %26 {strides = array<i32>} : memref<1x128xf32, #tpu.memory_space<vmem>>, vector<1x128xf32>,
    } else {
    }
    %c1_i32 = arith.constant 1 : i32
    %8 = arith.cmpi eq, %arg0, %c1_i32 : i32
    %c0_i32_4 = arith.constant 0 : i32
    %9 = arith.cmpi eq, %arg1, %c0_i32_4 : i32
    %10 = arith.andi %8, %9 : i1
    %11 = arith.extui %10 : i1 to i32
    %c0_i32_5 = arith.constant 0 : i32
    %12 = arith.cmpi ne, %11, %c0_i32_5 : i32
    scf.if %12 {
      %c0 = arith.constant 0 : index
      %c0_8 = arith.constant 0 : index
      %16 = vector.load %arg5[%c0, %c0_8] : memref<128x128xf32, #tpu.memory_space<vmem>>, vector<128x128xf32>
      %c0_9 = arith.constant 0 : index
      %c0_10 = arith.constant 0 : index
      %17 = vector.load %arg10[%c0_9, %c0_10] : memref<1x128xf32, #tpu.memory_space<vmem>>, vector<1x128xf32>
      %cst = arith.constant dense<0.000000e+00> : vector<1x128xf32>
      %18 = tpu.matmul %17, %16, %cst {dimension_numbers = #tpu.dot_dimension_numbers<[1], [0], [0], [1], [0, 0, 1, 1], [], []>} : vector<1x128xf32>, vector<128x128xf32>, vector<1x128xf32> -> vector<1x128xf32>
      %c0_11 = arith.constant 0 : index
      %c0_12 = arith.constant 0 : index
      %19 = vector.load %arg11[%c0_11, %c0_12] : memref<1x128xf32, #tpu.memory_space<vmem>>, vector<1x128xf32>
      %cst_13 = arith.constant dense<0.000000e+00> : vector<1x128xf32>
      %20 = tpu.matmul %19, %16, %cst_13 {dimension_numbers = #tpu.dot_dimension_numbers<[1], [0], [0], [1], [0, 0, 1, 1], [], []>} : vector<1x128xf32>, vector<128x128xf32>, vector<1x128xf32> -> vector<1x128xf32>
      %cst_14 = arith.constant 3.125000e-02 : f32
      %21 = vector.broadcast %cst_14 : f32 to vector<1x128xf32>
      %22 = arith.mulf %18, %21 : vector<1x128xf32>
      %cst_15 = arith.constant 3.125000e-02 : f32
      %23 = vector.broadcast %cst_15 : f32 to vector<1x128xf32>
      %24 = arith.mulf %20, %23 : vector<1x128xf32>
      %25 = arith.mulf %22, %22 : vector<1x128xf32>
      %26 = arith.subf %24, %25 : vector<1x128xf32>
      %cst_16 = arith.constant 0.000000e+00 : f32
      %27 = vector.broadcast %cst_16 : f32 to vector<1x128xf32>
      %28 = arith.maximumf %26, %27 : vector<1x128xf32>
      %c0_17 = arith.constant 0 : index
      %c0_18 = arith.constant 0 : index
      %29 = vector.load %arg3[%c0_17, %c0_18] : memref<1x128xf32, #tpu.memory_space<vmem>>, vector<1x128xf32>
      %cst_19 = arith.constant 9.99999974E-6 : f32
      %30 = vector.broadcast %cst_19 : f32 to vector<1x128xf32>
      %31 = arith.addf %28, %30 : vector<1x128xf32>
      %32 = math.rsqrt %31 : vector<1x128xf32>
      %33 = arith.mulf %29, %32 : vector<1x128xf32>
      %c0_20 = arith.constant 0 : index
      %c0_21 = arith.constant 0 : index
      %34 = vector.load %arg12[%c0_20, %c0_21] : memref<1x128xf32, #tpu.memory_space<vmem>>, vector<1x128xf32>
      tpu.vector_store %arg12[%c0_20, %c0_21], %33 {strides = array<i32>} : memref<1x128xf32, #tpu.memory_space<vmem>>, vector<1x128xf32>,
      %c0_22 = arith.constant 0 : index
      %c0_23 = arith.constant 0 : index
      %35 = vector.load %arg4[%c0_22, %c0_23] : memref<1x128xf32, #tpu.memory_space<vmem>>, vector<1x128xf32>
      %36 = arith.mulf %22, %33 : vector<1x128xf32>
      %37 = arith.subf %35, %36 : vector<1x128xf32>
      %c0_24 = arith.constant 0 : index
      %c0_25 = arith.constant 0 : index
      %38 = vector.load %arg13[%c0_24, %c0_25] : memref<1x128xf32, #tpu.memory_space<vmem>>, vector<1x128xf32>
      tpu.vector_store %arg13[%c0_24, %c0_25], %37 {strides = array<i32>} : memref<1x128xf32, #tpu.memory_space<vmem>>, vector<1x128xf32>,
      %cst_26 = arith.constant 0.000000e+00 : f32
      %39 = vector.broadcast %cst_26 : f32 to vector<1x128xf32>
      %c0_27 = arith.constant 0 : index
      %c0_28 = arith.constant 0 : index
      %40 = vector.load %arg8[%c0_27, %c0_28] : memref<1x128xf32, #tpu.memory_space<vmem>>, vector<1x128xf32>
      tpu.vector_store %arg8[%c0_27, %c0_28], %39 {strides = array<i32>} : memref<1x128xf32, #tpu.memory_space<vmem>>, vector<1x128xf32>,
      %cst_29 = arith.constant 0.000000e+00 : f32
      %41 = vector.broadcast %cst_29 : f32 to vector<1x128xf32>
      %c0_30 = arith.constant 0 : index
      %c0_31 = arith.constant 0 : index
      %42 = vector.load %arg9[%c0_30, %c0_31] : memref<1x128xf32, #tpu.memory_space<vmem>>, vector<1x128xf32>
      tpu.vector_store %arg9[%c0_30, %c0_31], %41 {strides = array<i32>} : memref<1x128xf32, #tpu.memory_space<vmem>>, vector<1x128xf32>,
    } else {
    }
    %c1_i32_6 = arith.constant 1 : i32
    %13 = arith.cmpi eq, %arg0, %c1_i32_6 : i32
    %14 = arith.extui %13 : i1 to i32
    %c0_i32_7 = arith.constant 0 : i32
    %15 = arith.cmpi ne, %14, %c0_i32_7 : i32
    scf.if %15 {
      %c0 = arith.constant 0 : index
      %c0_8 = arith.constant 0 : index
      %16 = vector.load %arg2[%c0, %c0_8] : memref<1x128xf32, #tpu.memory_space<vmem>>, vector<1x128xf32>
      %c0_9 = arith.constant 0 : index
      %c0_10 = arith.constant 0 : index
      %17 = vector.load %arg12[%c0_9, %c0_10] : memref<1x128xf32, #tpu.memory_space<vmem>>, vector<1x128xf32>
      %18 = arith.mulf %16, %17 : vector<1x128xf32>
      %c0_11 = arith.constant 0 : index
      %c0_12 = arith.constant 0 : index
      %19 = vector.load %arg13[%c0_11, %c0_12] : memref<1x128xf32, #tpu.memory_space<vmem>>, vector<1x128xf32>
      %20 = arith.addf %18, %19 : vector<1x128xf32>
      %c0_13 = arith.constant 0 : index
      %c0_14 = arith.constant 0 : index
      %21 = vector.load %arg6[%c0_13, %c0_14] : memref<128x128xf32, #tpu.memory_space<vmem>>, vector<128x128xf32>
      %cst = arith.constant dense<0.000000e+00> : vector<1x128xf32>
      %22 = tpu.matmul %20, %21, %cst {dimension_numbers = #tpu.dot_dimension_numbers<[1], [0], [0], [1], [0, 0, 1, 1], [], []>} : vector<1x128xf32>, vector<128x128xf32>, vector<1x128xf32> -> vector<1x128xf32>
      %cst_15 = arith.constant 5.000000e-01 : f32
      %23 = vector.broadcast %cst_15 : f32 to vector<1x128xf32>
      %24 = arith.mulf %23, %22 : vector<1x128xf32>
      %cst_16 = arith.constant 0.707106769 : f32
      %25 = vector.broadcast %cst_16 : f32 to vector<1x128xf32>
      %26 = arith.mulf %22, %25 : vector<1x128xf32>
      %27 = math.erf %26 : vector<1x128xf32>
      %cst_17 = arith.constant 1.000000e+00 : f32
      %28 = vector.broadcast %cst_17 : f32 to vector<1x128xf32>
      %29 = arith.addf %28, %27 : vector<1x128xf32>
      %30 = arith.mulf %24, %29 : vector<1x128xf32>
      %c0_18 = arith.constant 0 : index
      %c0_19 = arith.constant 0 : index
      %31 = vector.load %arg7[%c0_18, %c0_19] : memref<1x128xf32, #tpu.memory_space<vmem>>, vector<1x128xf32>
      tpu.vector_store %arg7[%c0_18, %c0_19], %30 {strides = array<i32>} : memref<1x128xf32, #tpu.memory_space<vmem>>, vector<1x128xf32>,
      %c0_20 = arith.constant 0 : index
      %c0_21 = arith.constant 0 : index
      %32 = vector.load %arg8[%c0_20, %c0_21] : memref<1x128xf32, #tpu.memory_space<vmem>>, vector<1x128xf32>
      %cst_22 = arith.constant dense<0.000000e+00> : vector<128xf32>
      %33 = vector.multi_reduction <add>, %30, %cst_22 [0] : vector<1x128xf32> to vector<128xf32>
      %34 = vector.shape_cast %33 : vector<128xf32> to vector<1x128xf32>
      %35 = arith.addf %32, %34 : vector<1x128xf32>
      %c0_23 = arith.constant 0 : index
      %c0_24 = arith.constant 0 : index
      %36 = vector.load %arg8[%c0_23, %c0_24] : memref<1x128xf32, #tpu.memory_space<vmem>>, vector<1x128xf32>
      tpu.vector_store %arg8[%c0_23, %c0_24], %35 {strides = array<i32>} : memref<1x128xf32, #tpu.memory_space<vmem>>, vector<1x128xf32>,
      %c0_25 = arith.constant 0 : index
      %c0_26 = arith.constant 0 : index
      %37 = vector.load %arg9[%c0_25, %c0_26] : memref<1x128xf32, #tpu.memory_space<vmem>>, vector<1x128xf32>
      %38 = arith.mulf %30, %30 : vector<1x128xf32>
      %cst_27 = arith.constant dense<0.000000e+00> : vector<128xf32>
      %39 = vector.multi_reduction <add>, %38, %cst_27 [0] : vector<1x128xf32> to vector<128xf32>
      %40 = vector.shape_cast %39 : vector<128xf32> to vector<1x128xf32>
      %41 = arith.addf %37, %40 : vector<1x128xf32>
      %c0_28 = arith.constant 0 : index
      %c0_29 = arith.constant 0 : index
      %42 = vector.load %arg9[%c0_28, %c0_29] : memref<1x128xf32, #tpu.memory_space<vmem>>, vector<1x128xf32>
      tpu.vector_store %arg9[%c0_28, %c0_29], %41 {strides = array<i32>} : memref<1x128xf32, #tpu.memory_space<vmem>>, vector<1x128xf32>,
    } else {
    }
    return
  }
  func.func @transform_0(%arg0: i32, %arg1: i32) -> (i32, i32) {
    %c0_i32 = arith.constant 0 : i32
    %c0_i32_0 = arith.constant 0 : i32
    return %arg1, %c0_i32 : i32, i32
  }
  func.func @transform_1(%arg0: i32, %arg1: i32) -> (i32, i32) {
    %c0_i32 = arith.constant 0 : i32
    %c0_i32_0 = arith.constant 0 : i32
    %c0_i32_1 = arith.constant 0 : i32
    return %c0_i32, %c0_i32_0 : i32, i32
  }
  func.func @transform_2(%arg0: i32, %arg1: i32) -> (i32, i32) {
    %c0_i32 = arith.constant 0 : i32
    %c0_i32_0 = arith.constant 0 : i32
    %c0_i32_1 = arith.constant 0 : i32
    return %c0_i32, %c0_i32_0 : i32, i32
  }
  func.func @transform_3(%arg0: i32, %arg1: i32) -> (i32, i32) {
    %c0_i32 = arith.constant 0 : i32
    %c0_i32_0 = arith.constant 0 : i32
    %c0_i32_1 = arith.constant 0 : i32
    return %c0_i32, %c0_i32_0 : i32, i32
  }
  func.func @transform_4(%arg0: i32, %arg1: i32) -> (i32, i32) {
    %c0_i32 = arith.constant 0 : i32
    %c0_i32_0 = arith.constant 0 : i32
    %c0_i32_1 = arith.constant 0 : i32
    return %c0_i32, %c0_i32_0 : i32, i32
  }
  func.func @transform_5(%arg0: i32, %arg1: i32) -> (i32, i32) {
    %0 = arith.muli %arg1, %arg0 : i32
    %c0_i32 = arith.constant 0 : i32
    %c0_i32_0 = arith.constant 0 : i32
    return %0, %c0_i32 : i32, i32
  }
  func.func @transform_6(%arg0: i32, %arg1: i32) -> (i32, i32) {
    %c0_i32 = arith.constant 0 : i32
    %c0_i32_0 = arith.constant 0 : i32
    %c0_i32_1 = arith.constant 0 : i32
    return %c0_i32, %c0_i32_0 : i32, i32
  }
  func.func @transform_7(%arg0: i32, %arg1: i32) -> (i32, i32) {
    %c0_i32 = arith.constant 0 : i32
    %c0_i32_0 = arith.constant 0 : i32
    %c0_i32_1 = arith.constant 0 : i32
    return %c0_i32, %c0_i32_0 : i32, i32
  }
}

module attributes {stable_mosaic.version = 11 : i64} {
  func.func @_downscale_apply_kernel(%arg0: i32, %arg1: memref<1x128xf32, #tpu.memory_space<vmem>>, %arg2: memref<128x128xf32, #tpu.memory_space<vmem>>, %arg3: memref<1x128xf32, #tpu.memory_space<vmem>>, %arg4: memref<1x128xf32, #tpu.memory_space<vmem>>) attributes {dimension_semantics = [#tpu.dimension_semantics<parallel>], iteration_bounds = array<i64: 1>, scalar_prefetch = 0 : i64, scratch_operands = 0 : i64, tpu.core_type = #tpu.core_type<tc>, window_params = [{transform_indices = @transform_0, window_bounds = array<i64: 1, 128>}, {pipeline_mode = #tpu.pipeline_mode<synchronous>, transform_indices = @transform_1, window_bounds = array<i64: 128, 128>}, {pipeline_mode = #tpu.pipeline_mode<synchronous>, transform_indices = @transform_2, window_bounds = array<i64: 1, 128>}, {transform_indices = @transform_3, window_bounds = array<i64: 1, 128>}]} {
    %c0 = arith.constant 0 : index
    %c0_0 = arith.constant 0 : index
    %0 = vector.load %arg1[%c0, %c0_0] : memref<1x128xf32, #tpu.memory_space<vmem>>, vector<1x128xf32>
    %c0_1 = arith.constant 0 : index
    %c0_2 = arith.constant 0 : index
    %1 = vector.load %arg2[%c0_1, %c0_2] : memref<128x128xf32, #tpu.memory_space<vmem>>, vector<128x128xf32>
    %cst = arith.constant dense<0.000000e+00> : vector<1x128xf32>
    %2 = tpu.matmul %0, %1, %cst {dimension_numbers = #tpu.dot_dimension_numbers<[1], [0], [0], [1], [0, 0, 1, 1], [], []>} : vector<1x128xf32>, vector<128x128xf32>, vector<1x128xf32> -> vector<1x128xf32>
    %c0_3 = arith.constant 0 : index
    %c0_4 = arith.constant 0 : index
    %3 = vector.load %arg3[%c0_3, %c0_4] : memref<1x128xf32, #tpu.memory_space<vmem>>, vector<1x128xf32>
    %4 = arith.addf %2, %3 : vector<1x128xf32>
    %cst_5 = arith.constant 5.000000e-01 : f32
    %5 = vector.broadcast %cst_5 : f32 to vector<1x128xf32>
    %6 = arith.mulf %5, %4 : vector<1x128xf32>
    %cst_6 = arith.constant 0.707106769 : f32
    %7 = vector.broadcast %cst_6 : f32 to vector<1x128xf32>
    %8 = arith.mulf %4, %7 : vector<1x128xf32>
    %9 = math.erf %8 : vector<1x128xf32>
    %cst_7 = arith.constant 1.000000e+00 : f32
    %10 = vector.broadcast %cst_7 : f32 to vector<1x128xf32>
    %11 = arith.addf %10, %9 : vector<1x128xf32>
    %12 = arith.mulf %6, %11 : vector<1x128xf32>
    %c0_8 = arith.constant 0 : index
    %c0_9 = arith.constant 0 : index
    %13 = vector.load %arg4[%c0_8, %c0_9] : memref<1x128xf32, #tpu.memory_space<vmem>>, vector<1x128xf32>
    tpu.vector_store %arg4[%c0_8, %c0_9], %12 {strides = array<i32>} : memref<1x128xf32, #tpu.memory_space<vmem>>, vector<1x128xf32>,
    return
  }
  func.func @transform_0(%arg0: i32) -> (i32, i32) {
    %c0_i32 = arith.constant 0 : i32
    %c0_i32_0 = arith.constant 0 : i32
    return %arg0, %c0_i32 : i32, i32
  }
  func.func @transform_1(%arg0: i32) -> (i32, i32) {
    %c0_i32 = arith.constant 0 : i32
    %c0_i32_0 = arith.constant 0 : i32
    %c0_i32_1 = arith.constant 0 : i32
    return %c0_i32, %c0_i32_0 : i32, i32
  }
  func.func @transform_2(%arg0: i32) -> (i32, i32) {
    %c0_i32 = arith.constant 0 : i32
    %c0_i32_0 = arith.constant 0 : i32
    %c0_i32_1 = arith.constant 0 : i32
    return %c0_i32, %c0_i32_0 : i32, i32
  }
  func.func @transform_3(%arg0: i32) -> (i32, i32) {
    %c0_i32 = arith.constant 0 : i32
    %c0_i32_0 = arith.constant 0 : i32
    return %arg0, %c0_i32 : i32, i32
  }
}

</mosaic_0001>

<llo_original>
// kernel: tile.28
$region0: #{tile.28}
  #allocation0 [shape = 's32[1]{0}', space=sflag, size = 0x4, scoped, tag = 'scoped memory for tile.28']
  %s0 = inlined_call_operand.vmem [shape: f32[4], index: 0, kind: input, shape index: {}]
  %s1 = inlined_call_operand.vmem [shape: f32[32,4], index: 1, kind: output, shape index: {}]
  // Predicated region
  $region2: #{tile.28} parent=0 // pred_check
    _
  $region3: #{tile.28} parent=0 // pred_check_branch
    %3 = sbr.rel (0) target = $region5
  $region4: #{tile.28} parent=0 // pred_region
    _
  $region5: #{tile.28} parent=0 // pred_fallthru
    _
  %v4 = vld [vmem:[%s0] ss:$0 sm:$0xff]
  %5 = vst [vmem:[%s1] sm:$0xff] %v4
  %s6 = scalar_lea.vmem %s1, 8
  %7 = vst [vmem:[%s6] sm:$0xff] %v4
  %s8 = scalar_lea.vmem %s1, 16
  %9 = vst [vmem:[%s8] sm:$0xff] %v4
  %s10 = scalar_lea.vmem %s1, 24
  %11 = vst [vmem:[%s10] sm:$0xff] %v4

// kernel: tile.29
$region0: #{tile.29}
  %s0 = inlined_call_operand.vmem [shape: f32[32,4], index: 0, kind: input, shape index: {}]
  %s1 = inlined_call_operand.vmem [shape: f32[1,128], index: 1, kind: output, shape index: {}]
  $region1: #{tile.29} parent=0
    #allocation0 [shape = 'u8[4096]{0}', space=vmem, size = 0x1000, scoped, tag = 'scoped mem for output reshape']
    %v2 = vld [vmem:[%s0] sm:$0x1]
    %vm3 = vcmask 31744
    %4 = vst.msk [vmem:[#allocation0] sm:$0x1] %vm3, %v2
    %s5 = scalar_lea.vmem %s0, 31
    %v6 = vld [vmem:[%s5] sm:$0x1]
    %7 = vrot.lane.b32.xlu0 %v6, 124
    %v8 = vpop.permute.xlu0 %7
    %vm9 = vcmask 1048544
    %10 = vst.msk [vmem:[#allocation0] sm:$0x1] %vm9, %v8
    %s11 = scalar_lea.vmem %s0, 30
    %v12 = vld [vmem:[%s11] sm:$0x1]
    %13 = vrot.lane.b32.xlu0 %v12, 120
    %v14 = vpop.permute.xlu0 %13
    %vm15 = vcmask 1015744
    %16 = vst.msk [vmem:[#allocation0] sm:$0x1] %vm15, %v14
    %s17 = scalar_lea.vmem %s0, 29
    %v18 = vld [vmem:[%s17] sm:$0x1]
    %19 = vrot.lane.b32.xlu0 %v18, 116
    %v20 = vpop.permute.xlu0 %19
    %vm21 = vcmask 982944
    %22 = vst.msk [vmem:[#allocation0] sm:$0x1] %vm21, %v20
    %s23 = scalar_lea.vmem %s0, 28
    %v24 = vld [vmem:[%s23] sm:$0x1]
    %25 = vrot.lane.b32.xlu0 %v24, 112
    %v26 = vpop.permute.xlu0 %25
    %vm27 = vcmask 950144
    %28 = vst.msk [vmem:[#allocation0] sm:$0x1] %vm27, %v26
    %s29 = scalar_lea.vmem %s0, 27
    %v30 = vld [vmem:[%s29] sm:$0x1]
    %31 = vrot.lane.b32.xlu0 %v30, 108
    %v32 = vpop.permute.xlu0 %31
    %vm33 = vcmask 917344
    %34 = vst.msk [vmem:[#allocation0] sm:$0x1] %vm33, %v32
    %s35 = scalar_lea.vmem %s0, 26
    %v36 = vld [vmem:[%s35] sm:$0x1]
    %37 = vrot.lane.b32.xlu0 %v36, 104
    %v38 = vpop.permute.xlu0 %37
    %vm39 = vcmask 884544
    %40 = vst.msk [vmem:[#allocation0] sm:$0x1] %vm39, %v38
    %s41 = scalar_lea.vmem %s0, 25
    %v42 = vld [vmem:[%s41] sm:$0x1]
    %43 = vrot.lane.b32.xlu0 %v42, 100
    %v44 = vpop.permute.xlu0 %43
    %vm45 = vcmask 851744
    %46 = vst.msk [vmem:[#allocation0] sm:$0x1] %vm45, %v44
    %s47 = scalar_lea.vmem %s0, 24
    %v48 = vld [vmem:[%s47] sm:$0x1]
    %49 = vrot.lane.b32.xlu0 %v48, 96
    %v50 = vpop.permute.xlu0 %49
    %vm51 = vcmask 818944
    %52 = vst.msk [vmem:[#allocation0] sm:$0x1] %vm51, %v50
    %s53 = scalar_lea.vmem %s0, 23
    %v54 = vld [vmem:[%s53] sm:$0x1]
    %55 = vrot.lane.b32.xlu0 %v54, 92
    %v56 = vpop.permute.xlu0 %55
    %vm57 = vcmask 786144
    %58 = vst.msk [vmem:[#allocation0] sm:$0x1] %vm57, %v56
    %s59 = scalar_lea.vmem %s0, 22
    %v60 = vld [vmem:[%s59] sm:$0x1]
    %61 = vrot.lane.b32.xlu0 %v60, 88
    %v62 = vpop.permute.xlu0 %61
    %vm63 = vcmask 753344
    %64 = vst.msk [vmem:[#allocation0] sm:$0x1] %vm63, %v62
    %s65 = scalar_lea.vmem %s0, 21
    %v66 = vld [vmem:[%s65] sm:$0x1]
    %67 = vrot.lane.b32.xlu0 %v66, 84
    %v68 = vpop.permute.xlu0 %67
    %vm69 = vcmask 720544
    %70 = vst.msk [vmem:[#allocation0] sm:$0x1] %vm69, %v68
    %s71 = scalar_lea.vmem %s0, 20
    %v72 = vld [vmem:[%s71] sm:$0x1]
    %73 = vrot.lane.b32.xlu0 %v72, 80
    %v74 = vpop.permute.xlu0 %73
    %vm75 = vcmask 687744
    %76 = vst.msk [vmem:[#allocation0] sm:$0x1] %vm75, %v74
    %s77 = scalar_lea.vmem %s0, 19
    %v78 = vld [vmem:[%s77] sm:$0x1]
    %79 = vrot.lane.b32.xlu0 %v78, 76
    %v80 = vpop.permute.xlu0 %79
    %vm81 = vcmask 654944
    %82 = vst.msk [vmem:[#allocation0] sm:$0x1] %vm81, %v80
    %s83 = scalar_lea.vmem %s0, 18
    %v84 = vld [vmem:[%s83] sm:$0x1]
    %85 = vrot.lane.b32.xlu0 %v84, 72
    %v86 = vpop.permute.xlu0 %85
    %vm87 = vcmask 622144
    %88 = vst.msk [vmem:[#allocation0] sm:$0x1] %vm87, %v86
    %s89 = scalar_lea.vmem %s0, 17
    %v90 = vld [vmem:[%s89] sm:$0x1]
    %91 = vrot.lane.b32.xlu0 %v90, 68
    %v92 = vpop.permute.xlu0 %91
    %vm93 = vcmask 589344
    %94 = vst.msk [vmem:[#allocation0] sm:$0x1] %vm93, %v92
    %s95 = scalar_lea.vmem %s0, 16
    %v96 = vld [vmem:[%s95] sm:$0x1]
    %97 = vrot.lane.b32.xlu0 %v96, 64
    %v98 = vpop.permute.xlu0 %97
    %vm99 = vcmask 556544
    %100 = vst.msk [vmem:[#allocation0] sm:$0x1] %vm99, %v98
    %s101 = scalar_lea.vmem %s0, 15
    %v102 = vld [vmem:[%s101] sm:$0x1]
    %103 = vrot.lane.b32.xlu0 %v102, 60
    %v104 = vpop.permute.xlu0 %103
    %vm105 = vcmask 523744
    %106 = vst.msk [vmem:[#allocation0] sm:$0x1] %vm105, %v104
    %s107 = scalar_lea.vmem %s0, 14
    %v108 = vld [vmem:[%s107] sm:$0x1]
    %109 = vrot.lane.b32.xlu0 %v108, 56
    %v110 = vpop.permute.xlu0 %109
    %vm111 = vcmask 490944
    %112 = vst.msk [vmem:[#allocation0] sm:$0x1] %vm111, %v110
    %s113 = scalar_lea.vmem %s0, 13
    %v114 = vld [vmem:[%s113] sm:$0x1]
    %115 = vrot.lane.b32.xlu0 %v114, 52
    %v116 = vpop.permute.xlu0 %115
    %vm117 = vcmask 458144
    %118 = vst.msk [vmem:[#allocation0] sm:$0x1] %vm117, %v116
    %s119 = scalar_lea.vmem %s0, 12
    %v120 = vld [vmem:[%s119] sm:$0x1]
    %121 = vrot.lane.b32.xlu0 %v120, 48
    %v122 = vpop.permute.xlu0 %121
    %vm123 = vcmask 425344
    %124 = vst.msk [vmem:[#allocation0] sm:$0x1] %vm123, %v122
    %s125 = scalar_lea.vmem %s0, 11
    %v126 = vld [vmem:[%s125] sm:$0x1]
    %127 = vrot.lane.b32.xlu0 %v126, 44
    %v128 = vpop.permute.xlu0 %127
    %vm129 = vcmask 392544
    %130 = vst.msk [vmem:[#allocation0] sm:$0x1] %vm129, %v128
    %s131 = scalar_lea.vmem %s0, 10
    %v132 = vld [vmem:[%s131] sm:$0x1]
    %133 = vrot.lane.b32.xlu0 %v132, 40
    %v134 = vpop.permute.xlu0 %133
    %vm135 = vcmask 359744
    %136 = vst.msk [vmem:[#allocation0] sm:$0x1] %vm135, %v134
    %s137 = scalar_lea.vmem %s0, 9
    %v138 = vld [vmem:[%s137] sm:$0x1]
    %139 = vrot.lane.b32.xlu0 %v138, 36
    %v140 = vpop.permute.xlu0 %139
    %vm141 = vcmask 326944
    %142 = vst.msk [vmem:[#allocation0] sm:$0x1] %vm141, %v140
    %s143 = scalar_lea.vmem %s0, 8
    %v144 = vld [vmem:[%s143] sm:$0x1]
    %145 = vrot.lane.b32.xlu0 %v144, 32
    %v146 = vpop.permute.xlu0 %145
    %vm147 = vcmask 294144
    %148 = vst.msk [vmem:[#allocation0] sm:$0x1] %vm147, %v146
    %s149 = scalar_lea.vmem %s0, 7
    %v150 = vld [vmem:[%s149] sm:$0x1]
    %151 = vrot.lane.b32.xlu0 %v150, 28
    %v152 = vpop.permute.xlu0 %151
    %vm153 = vcmask 261344
    %154 = vst.msk [vmem:[#allocation0] sm:$0x1] %vm153, %v152
    %s155 = scalar_lea.vmem %s0, 6
    %v156 = vld [vmem:[%s155] sm:$0x1]
    %157 = vrot.lane.b32.xlu0 %v156, 24
    %v158 = vpop.permute.xlu0 %157
    %vm159 = vcmask 228544
    %160 = vst.msk [vmem:[#allocation0] sm:$0x1] %vm159, %v158
    %s161 = scalar_lea.vmem %s0, 5
    %v162 = vld [vmem:[%s161] sm:$0x1]
    %163 = vrot.lane.b32.xlu0 %v162, 20
    %v164 = vpop.permute.xlu0 %163
    %vm165 = vcmask 195744
    %166 = vst.msk [vmem:[#allocation0] sm:$0x1] %vm165, %v164
    %s167 = scalar_lea.vmem %s0, 4
    %v168 = vld [vmem:[%s167] sm:$0x1]
    %169 = vrot.lane.b32.xlu0 %v168, 16
    %v170 = vpop.permute.xlu0 %169
    %vm171 = vcmask 162944
    %172 = vst.msk [vmem:[#allocation0] sm:$0x1] %vm171, %v170
    %s173 = scalar_lea.vmem %s0, 3
    %v174 = vld [vmem:[%s173] sm:$0x1]
    %175 = vrot.lane.b32.xlu0 %v174, 12
    %v176 = vpop.permute.xlu0 %175
    %vm177 = vcmask 130144
    %178 = vst.msk [vmem:[#allocation0] sm:$0x1] %vm177, %v176
    %s179 = scalar_lea.vmem %s0, 2
    %v180 = vld [vmem:[%s179] sm:$0x1]
    %181 = vrot.lane.b32.xlu0 %v180, 8
    %v182 = vpop.permute.xlu0 %181
    %vm183 = vcmask 97344
    %184 = vst.msk [vmem:[#allocation0] sm:$0x1] %vm183, %v182
    %s185 = scalar_lea.vmem %s0, 1
    %v186 = vld [vmem:[%s185] sm:$0x1]
    %187 = vrot.lane.b32.xlu0 %v186, 4
    %v188 = vpop.permute.xlu0 %187
    %vm189 = vcmask 64544
    %190 = vst.msk [vmem:[#allocation0] sm:$0x1] %vm189, %v188
    %s192 = ssub.s32 2, 1
    %v193 = vld [vmem:[#allocation0] sm:%s192]
    %s195 = ssub.s32 2, 1
    %196 = vst [vmem:[%s1] sm:%s195] %v193

// kernel: tile.38
$region0: #{tile.38}
  #allocation0 [shape = 's32[1]{0}', space=sflag, size = 0x4, scoped, tag = 'scoped memory for tile.38']
  %s0 = inlined_call_operand.vmem [shape: f32[8], index: 0, kind: input, shape index: {}]
  %s1 = inlined_call_operand.vmem [shape: f32[2,8], index: 1, kind: output, shape index: {}]
  // Predicated region
  $region2: #{tile.38} parent=0 // pred_check
    _
  $region3: #{tile.38} parent=0 // pred_check_branch
    %3 = sbr.rel (0) target = $region5
  $region4: #{tile.38} parent=0 // pred_region
    _
  $region5: #{tile.38} parent=0 // pred_fallthru
    _
  %v4 = vld [vmem:[%s0] ss:$0 sm:$0xff]
  %5 = vst [vmem:[%s1] sm:$0x3] %v4

// kernel: tile.48
$region0: #{tile.48}
  #allocation0 [shape = 's32[1]{0}', space=sflag, size = 0x4, scoped, tag = 'scoped memory for tile.48']
  %s0 = inlined_call_operand.vmem [shape: f32[16], index: 0, kind: input, shape index: {}]
  %s1 = inlined_call_operand.vmem [shape: f32[8,16], index: 1, kind: output, shape index: {}]
  // Predicated region
  $region2: #{tile.48} parent=0 // pred_check
    _
  $region3: #{tile.48} parent=0 // pred_check_branch
    %3 = sbr.rel (0) target = $region5
  $region4: #{tile.48} parent=0 // pred_region
    _
  $region5: #{tile.48} parent=0 // pred_fallthru
    _
  %v4 = vld [vmem:[%s0] ss:$0 sm:$0xff]
  %5 = vst [vmem:[%s1] sm:$0xff] %v4

// kernel: tile.49
$region0: #{tile.49}
  %s0 = inlined_call_operand.vmem [shape: f32[8,16], index: 0, kind: input, shape index: {}]
  %s1 = inlined_call_operand.vmem [shape: f32[1,128], index: 1, kind: output, shape index: {}]
  $region1: #{tile.49} parent=0
    #allocation0 [shape = 'u8[4096]{0}', space=vmem, size = 0x1000, scoped, tag = 'scoped mem for output reshape']
    %v2 = vld [vmem:[%s0] sm:$0x1]
    %vm3 = vcmask 130048
    %4 = vst.msk [vmem:[#allocation0] sm:$0x1] %vm3, %v2
    %s5 = scalar_lea.vmem %s0, 7
    %v6 = vld [vmem:[%s5] sm:$0x1]
    %7 = vrot.lane.b32.xlu0 %v6, 112
    %v8 = vpop.permute.xlu0 %7
    %vm9 = vcmask 1048448
    %10 = vst.msk [vmem:[#allocation0] sm:$0x1] %vm9, %v8
    %s11 = scalar_lea.vmem %s0, 6
    %v12 = vld [vmem:[%s11] sm:$0x1]
    %13 = vrot.lane.b32.xlu0 %v12, 96
    %v14 = vpop.permute.xlu0 %13
    %vm15 = vcmask 917248
    %16 = vst.msk [vmem:[#allocation0] sm:$0x1] %vm15, %v14
    %s17 = scalar_lea.vmem %s0, 5
    %v18 = vld [vmem:[%s17] sm:$0x1]
    %19 = vrot.lane.b32.xlu0 %v18, 80
    %v20 = vpop.permute.xlu0 %19
    %vm21 = vcmask 786048
    %22 = vst.msk [vmem:[#allocation0] sm:$0x1] %vm21, %v20
    %s23 = scalar_lea.vmem %s0, 4
    %v24 = vld [vmem:[%s23] sm:$0x1]
    %25 = vrot.lane.b32.xlu0 %v24, 64
    %v26 = vpop.permute.xlu0 %25
    %vm27 = vcmask 654848
    %28 = vst.msk [vmem:[#allocation0] sm:$0x1] %vm27, %v26
    %s29 = scalar_lea.vmem %s0, 3
    %v30 = vld [vmem:[%s29] sm:$0x1]
    %31 = vrot.lane.b32.xlu0 %v30, 48
    %v32 = vpop.permute.xlu0 %31
    %vm33 = vcmask 523648
    %34 = vst.msk [vmem:[#allocation0] sm:$0x1] %vm33, %v32
    %s35 = scalar_lea.vmem %s0, 2
    %v36 = vld [vmem:[%s35] sm:$0x1]
    %37 = vrot.lane.b32.xlu0 %v36, 32
    %v38 = vpop.permute.xlu0 %37
    %vm39 = vcmask 392448
    %40 = vst.msk [vmem:[#allocation0] sm:$0x1] %vm39, %v38
    %s41 = scalar_lea.vmem %s0, 1
    %v42 = vld [vmem:[%s41] sm:$0x1]
    %43 = vrot.lane.b32.xlu0 %v42, 16
    %v44 = vpop.permute.xlu0 %43
    %vm45 = vcmask 261248
    %46 = vst.msk [vmem:[#allocation0] sm:$0x1] %vm45, %v44
    %s48 = ssub.s32 2, 1
    %v49 = vld [vmem:[#allocation0] sm:%s48]
    %s51 = ssub.s32 2, 1
    %52 = vst [vmem:[%s1] sm:%s51] %v49

// kernel: bottleneck_with_intermediates.2
$region0: #{bottleneck_with_intermediates.2}
  #allocation0 [shape = 'u32[]', space=smem, size = 0x4, offset = 0x4, fixed_abs, tag = 'smem constant byte address 0x4 - core index']
  #allocation1 [shape = 'u32[72,128]{1,0:T(1,128)}', space=vmem, size = 0x9000, scoped, tag = 'internal scratch']
  #allocation2 [shape = 'f32[1,128]{1,0:T(1,128)}', space=vmem, size = 0x200, scoped, tag = 'scratch operand']
  #allocation3 [shape = 'f32[1,128]{1,0:T(1,128)}', space=vmem, size = 0x200, scoped, tag = 'scratch operand']
  #allocation4 [shape = 'f32[1,128]{1,0:T(1,128)}', space=vmem, size = 0x200, scoped, tag = 'scratch operand']
  #allocation5 [shape = 'f32[1,128]{1,0:T(1,128)}', space=vmem, size = 0x200, scoped, tag = 'scratch operand']
  %s0 = inlined_call_operand.vmem [shape: f32[1,128], index: 0, kind: input, shape index: {}]
  %s1 = inlined_call_operand.vmem [shape: f32[1,128], index: 1, kind: input, shape index: {}]
  %s2 = inlined_call_operand.vmem [shape: f32[1,128], index: 2, kind: input, shape index: {}]
  %s3 = inlined_call_operand.vmem [shape: f32[128,128], index: 3, kind: input, shape index: {}]
  %s4 = inlined_call_operand.vmem [shape: f32[128,128], index: 4, kind: input, shape index: {}]
  %s5 = inlined_call_operand.vmem [shape: f32[1,128], index: 5, kind: output, shape index: {0}]
  %s6 = inlined_call_operand.vmem [shape: f32[1,128], index: 6, kind: output, shape index: {1}]
  %s7 = inlined_call_operand.vmem [shape: f32[1,128], index: 7, kind: output, shape index: {2}]
  %8 = xla_tuple %s5, %s6, %s7
  %s9 = sld [smem:[#allocation0]]
  $region85: #{bottleneck_with_intermediates.2} parent=0
    _
  %s11 = ssub.s32 1, %s9
  %s12 = scalar_select 0, %s11, %s9
  loop: start=0, step=1, limit=4
  $region2: #{bottleneck_with_intermediates.2} parent=0 // loop_pre_header
    _
  $region3: #{bottleneck_with_intermediates.2} parent=0 // loop_header
    %s14 = sphi 0, %s18
    %p15 = scmp.ge.s32.totalorder %s14, 4
    %s21 = sphi 0, %s33
    %s22 = sphi 0, %s29
    %s23 = sphi 0, %s21
    %s24 = sphi 0, %s22
    %s25 = sphi 0, %s23
    %s26 = sphi 0, %s24
    %s36 = sphi 0, %s38
    %s39 = sphi 0, %s36
    %s40 = sphi 0, %s39
    %s56 = sphi 0, %s40
    %s60 = sphi 0, %s60
    %s62 = sphi 0, %s60
    %s63 = sphi 0, %s62
    %s77 = sphi 0, %s63
    %s81 = sphi 0, %s81
    %s83 = sphi 0, %s81
    %s84 = sphi 0, %s83
    %s98 = sphi 0, %s84
    %s102 = sphi 0, %s102
    %s104 = sphi 0, %s102
    %s105 = sphi 0, %s104
    %s119 = sphi 0, %s105
    %s123 = sphi 0, %s123
    %s125 = sphi 0, %s123
    %s126 = sphi 0, %s125
    %s140 = sphi 0, %s126
    %s148 = sphi 0, %s150
    %s151 = sphi 0, %s148
    %s152 = sphi 0, %s151
    %s168 = sphi 0, %s152
    %s172 = sphi 0, %s172
    %s174 = sphi 0, %s172
    %s175 = sphi 0, %s174
    %s189 = sphi 0, %s175
    %s193 = sphi 0, %s193
    %s195 = sphi 0, %s193
    %s196 = sphi 0, %s195
    %s210 = sphi 0, %s196
  $region4: #{bottleneck_with_intermediates.2} parent=0 // loop_header_branch
    %17 = sbr.rel (%p15) target = $region8
  $region5: #{bottleneck_with_intermediates.2} parent=0 // loop_body
    %s19 = ssub.s32 %s14, 1
    %s20 = ssub.s32 %s14, 2
    %s27 = sadd.s32 1, %s22
    %p28 = scmp.ge.s32.totalorder %s27, 1
    %s29 = scalar_select %p28, 0, %s27
    %s30 = sadd.s32 1, %s21
    %s31 = scalar_select %p28, %s30, %s21
    %p32 = scmp.ge.s32.totalorder %s31, 2
    %s33 = scalar_select %p32, 0, %s31
    %s34 = ssub.s32 %s22, %s29
    %p35 = scmp.eq.s32.totalorder %s34, 0
    %s37 = sadd.s32 %s36, 1
    %s38 = scalar_select %p35, %s36, %s37
    %p41 = pneg %p35
    %p42 = scmp.eq.s32.totalorder %s14, 1
    %p43 = por %p41, %p42
    %p44 = scmp.ne.s32.totalorder %s36, %s39
    %p45 = scmp.eq.s32.totalorder %s14, 0
    %p46 = por %p44, %p45
    %p47 = scmp.ne.s32.totalorder %s36, %s39
    %p48 = scmp.eq.s32.totalorder %s19, 1
    %p49 = por %p47, %p48
    %p50 = scmp.ne.s32.totalorder %s39, %s40
    %p51 = scmp.eq.s32.totalorder %s19, 0
    %p52 = por %p50, %p51
    %p53 = scmp.ne.s32.totalorder %s39, %s40
    %p54 = scmp.eq.s32.totalorder %s20, 1
    %p55 = por %p53, %p54
    %p57 = scmp.ne.s32.totalorder %s40, %s56
    %p58 = scmp.eq.s32.totalorder %s20, 0
    %p59 = por %p57, %p58
    %s61 = sadd.s32 %s60, 1
    %p64 = scmp.eq.s32.totalorder %s14, 1
    %p65 = scmp.ne.s32.totalorder %s60, %s62
    %p66 = scmp.eq.s32.totalorder %s14, 0
    %p67 = por %p65, %p66
    %p68 = scmp.ne.s32.totalorder %s60, %s62
    %p69 = scmp.eq.s32.totalorder %s19, 1
    %p70 = por %p68, %p69
    %p71 = scmp.ne.s32.totalorder %s62, %s63
    %p72 = scmp.eq.s32.totalorder %s19, 0
    %p73 = por %p71, %p72
    %p74 = scmp.ne.s32.totalorder %s62, %s63
    %p75 = scmp.eq.s32.totalorder %s20, 1
    %p76 = por %p74, %p75
    %p78 = scmp.ne.s32.totalorder %s63, %s77
    %p79 = scmp.eq.s32.totalorder %s20, 0
    %p80 = por %p78, %p79
    %s82 = sadd.s32 %s81, 1
    %p85 = scmp.eq.s32.totalorder %s14, 1
    %p86 = scmp.ne.s32.totalorder %s81, %s83
    %p87 = scmp.eq.s32.totalorder %s14, 0
    %p88 = por %p86, %p87
    %p89 = scmp.ne.s32.totalorder %s81, %s83
    %p90 = scmp.eq.s32.totalorder %s19, 1
    %p91 = por %p89, %p90
    %p92 = scmp.ne.s32.totalorder %s83, %s84
    %p93 = scmp.eq.s32.totalorder %s19, 0
    %p94 = por %p92, %p93
    %p95 = scmp.ne.s32.totalorder %s83, %s84
    %p96 = scmp.eq.s32.totalorder %s20, 1
    %p97 = por %p95, %p96
    %p99 = scmp.ne.s32.totalorder %s84, %s98
    %p100 = scmp.eq.s32.totalorder %s20, 0
    %p101 = por %p99, %p100
    %s103 = sadd.s32 %s102, 1
    %p106 = scmp.eq.s32.totalorder %s14, 1
    %p107 = scmp.ne.s32.totalorder %s102, %s104
    %p108 = scmp.eq.s32.totalorder %s14, 0
    %p109 = por %p107, %p108
    %p110 = scmp.ne.s32.totalorder %s102, %s104
    %p111 = scmp.eq.s32.totalorder %s19, 1
    %p112 = por %p110, %p111
    %p113 = scmp.ne.s32.totalorder %s104, %s105
    %p114 = scmp.eq.s32.totalorder %s19, 0
    %p115 = por %p113, %p114
    %p116 = scmp.ne.s32.totalorder %s104, %s105
    %p117 = scmp.eq.s32.totalorder %s20, 1
    %p118 = por %p116, %p117
    %p120 = scmp.ne.s32.totalorder %s105, %s119
    %p121 = scmp.eq.s32.totalorder %s20, 0
    %p122 = por %p120, %p121
    %s124 = sadd.s32 %s123, 1
    %p127 = scmp.eq.s32.totalorder %s14, 1
    %p128 = scmp.ne.s32.totalorder %s123, %s125
    %p129 = scmp.eq.s32.totalorder %s14, 0
    %p130 = por %p128, %p129
    %p131 = scmp.ne.s32.totalorder %s123, %s125
    %p132 = scmp.eq.s32.totalorder %s19, 1
    %p133 = por %p131, %p132
    %p134 = scmp.ne.s32.totalorder %s125, %s126
    %p135 = scmp.eq.s32.totalorder %s19, 0
    %p136 = por %p134, %p135
    %p137 = scmp.ne.s32.totalorder %s125, %s126
    %p138 = scmp.eq.s32.totalorder %s20, 1
    %p139 = por %p137, %p138
    %p141 = scmp.ne.s32.totalorder %s126, %s140
    %p142 = scmp.eq.s32.totalorder %s20, 0
    %p143 = por %p141, %p142
    %s144 = smul.u32 %s22, %s21
    %s145 = smul.u32 %s29, %s33
    %s146 = ssub.s32 %s144, %s145
    %p147 = scmp.eq.s32.totalorder %s146, 0
    %s149 = sadd.s32 %s148, 1
    %s150 = scalar_select %p147, %s148, %s149
    %p153 = pneg %p147
    %p154 = scmp.eq.s32.totalorder %s14, 1
    %p155 = por %p153, %p154
    %p156 = scmp.ne.s32.totalorder %s148, %s151
    %p157 = scmp.eq.s32.totalorder %s14, 0
    %p158 = por %p156, %p157
    %p159 = scmp.ne.s32.totalorder %s148, %s151
    %p160 = scmp.eq.s32.totalorder %s19, 1
    %p161 = por %p159, %p160
    %p162 = scmp.ne.s32.totalorder %s151, %s152
    %p163 = scmp.eq.s32.totalorder %s19, 0
    %p164 = por %p162, %p163
    %p165 = scmp.ne.s32.totalorder %s151, %s152
    %p166 = scmp.eq.s32.totalorder %s20, 1
    %p167 = por %p165, %p166
    %p169 = scmp.ne.s32.totalorder %s152, %s168
    %p170 = scmp.eq.s32.totalorder %s20, 0
    %p171 = por %p169, %p170
    %s173 = sadd.s32 %s172, 1
    %p176 = scmp.eq.s32.totalorder %s14, 1
    %p177 = scmp.ne.s32.totalorder %s172, %s174
    %p178 = scmp.eq.s32.totalorder %s14, 0
    %p179 = por %p177, %p178
    %p180 = scmp.ne.s32.totalorder %s172, %s174
    %p181 = scmp.eq.s32.totalorder %s19, 1
    %p182 = por %p180, %p181
    %p183 = scmp.ne.s32.totalorder %s174, %s175
    %p184 = scmp.eq.s32.totalorder %s19, 0
    %p185 = por %p183, %p184
    %p186 = scmp.ne.s32.totalorder %s174, %s175
    %p187 = scmp.eq.s32.totalorder %s20, 1
    %p188 = por %p186, %p187
    %p190 = scmp.ne.s32.totalorder %s175, %s189
    %p191 = scmp.eq.s32.totalorder %s20, 0
    %p192 = por %p190, %p191
    %s194 = sadd.s32 %s193, 1
    %p197 = scmp.eq.s32.totalorder %s14, 1
    %p198 = scmp.ne.s32.totalorder %s193, %s195
    %p199 = scmp.eq.s32.totalorder %s14, 0
    %p200 = por %p198, %p199
    %p201 = scmp.ne.s32.totalorder %s193, %s195
    %p202 = scmp.eq.s32.totalorder %s19, 1
    %p203 = por %p201, %p202
    %p204 = scmp.ne.s32.totalorder %s195, %s196
    %p205 = scmp.eq.s32.totalorder %s19, 0
    %p206 = por %p204, %p205
    %p207 = scmp.ne.s32.totalorder %s195, %s196
    %p208 = scmp.eq.s32.totalorder %s20, 1
    %p209 = por %p207, %p208
    %p211 = scmp.ne.s32.totalorder %s196, %s210
    %p212 = scmp.eq.s32.totalorder %s20, 0
    %p213 = por %p211, %p212
    %p214 = scmp.le.s32.totalorder 1, %s14
    %p215 = scmp.lt.s32.totalorder %s14, 3
    %p216 = pnand %p214, %p215
    %p217 = pneg %p216
    // Predicated region
    $region9: #{bottleneck_with_intermediates.2} parent=5 // pred_check
      _
    $region10: #{bottleneck_with_intermediates.2} parent=5 // pred_check_branch
      %219 = sbr.rel (%p216) target = $region12
    $region11: #{bottleneck_with_intermediates.2} parent=5 // pred_region
      %s220 = ssub.s32 %s14, 1
      // Predicated region
      $region13: #{bottleneck_with_intermediates.2} parent=11 // pred_check
        %p221 = pneg %p52
      $region14: #{bottleneck_with_intermediates.2} parent=11 // pred_check_branch
        %223 = sbr.rel (%p221) target = $region16
      $region15: #{bottleneck_with_intermediates.2} parent=11 // pred_region
        %p224 = scmp.lt.s32.totalorder %s24, 0
        %s225 = scalar_select %p224, %s24, 0
        %s226 = scalar_lea.vmem %s0, %s225
      $region16: #{bottleneck_with_intermediates.2} parent=11 // pred_fallthru
        _
      // Predicated region
      $region17: #{bottleneck_with_intermediates.2} parent=11 // pred_check
        %p227 = pneg %p73
      $region18: #{bottleneck_with_intermediates.2} parent=11 // pred_check_branch
        %229 = sbr.rel (%p227) target = $region20
      $region19: #{bottleneck_with_intermediates.2} parent=11 // pred_region
        _
      $region20: #{bottleneck_with_intermediates.2} parent=11 // pred_fallthru
        _
      // Predicated region
      $region21: #{bottleneck_with_intermediates.2} parent=11 // pred_check
        %p230 = pneg %p94
      $region22: #{bottleneck_with_intermediates.2} parent=11 // pred_check_branch
        %232 = sbr.rel (%p230) target = $region24
      $region23: #{bottleneck_with_intermediates.2} parent=11 // pred_region
        _
      $region24: #{bottleneck_with_intermediates.2} parent=11 // pred_fallthru
        _
      // Predicated region
      $region25: #{bottleneck_with_intermediates.2} parent=11 // pred_check
        %p233 = pneg %p115
      $region26: #{bottleneck_with_intermediates.2} parent=11 // pred_check_branch
        %235 = sbr.rel (%p233) target = $region28
      $region27: #{bottleneck_with_intermediates.2} parent=11 // pred_region
        _
      $region28: #{bottleneck_with_intermediates.2} parent=11 // pred_fallthru
        _
      // Predicated region
      $region29: #{bottleneck_with_intermediates.2} parent=11 // pred_check
        %p236 = pneg %p136
      $region30: #{bottleneck_with_intermediates.2} parent=11 // pred_check_branch
        %238 = sbr.rel (%p236) target = $region32
      $region31: #{bottleneck_with_intermediates.2} parent=11 // pred_region
        _
      $region32: #{bottleneck_with_intermediates.2} parent=11 // pred_fallthru
        _
    $region12: #{bottleneck_with_intermediates.2} parent=5 // pred_fallthru
      _
    %p239 = scmp.lt.s32.totalorder %s14, 2
    // Predicated region
    $region33: #{bottleneck_with_intermediates.2} parent=5 // pred_check
      %p240 = pneg %p239
    $region34: #{bottleneck_with_intermediates.2} parent=5 // pred_check_branch
      %242 = sbr.rel (%p240) target = $region36
    $region35: #{bottleneck_with_intermediates.2} parent=5 // pred_region
      _
    $region36: #{bottleneck_with_intermediates.2} parent=5 // pred_fallthru
      _
    %p243 = scmp.le.s32.totalorder 1, %s14
    %p244 = scmp.lt.s32.totalorder %s14, 3
    %p245 = pnand %p243, %p244
    %p246 = pneg %p245
    // Predicated region
    $region37: #{bottleneck_with_intermediates.2} parent=5 // pred_check
      _
    $region38: #{bottleneck_with_intermediates.2} parent=5 // pred_check_branch
      %248 = sbr.rel (%p245) target = $region40
    $region39: #{bottleneck_with_intermediates.2} parent=5 // pred_region
      %s249 = ssub.s32 %s14, 1
      %p250 = scmp.lt.s32.totalorder %s24, 0
      %s251 = scalar_select %p250, %s24, 0
      %s252 = scalar_lea.vmem %s0, %s251
      %p253 = pneg %p52
      %p254 = pneg %p49
      %p255 = pneg %p73
      %p256 = pneg %p70
      %p257 = pneg %p94
      %p258 = pneg %p91
      %p259 = pneg %p115
      %p260 = pneg %p112
      %p261 = pneg %p136
      %p262 = pneg %p133
      %p263 = pneg %p164
      %p264 = pneg %p161
      %s265 = smul.u32 %s24, %s23
      %p266 = scmp.lt.s32.totalorder %s265, 0
      %s267 = scalar_select %p266, %s265, 0
      %s268 = scalar_lea.vmem %s5, %s267
      %p269 = pneg %p185
      %p270 = pneg %p182
      %p271 = pneg %p206
      %p272 = pneg %p203
      %p273 = scmp.lt.s32.totalorder %s24, 0
      %s274 = scalar_select %p273, %s24, 0
      %s275 = scalar_lea.vmem %s0, %s274
      %s276 = smul.u32 %s24, %s23
      %p277 = scmp.lt.s32.totalorder %s276, 0
      %s278 = scalar_select %p277, %s276, 0
      %s279 = scalar_lea.vmem %s5, %s278
      %s280 = smul.u32 %s24, %s23
      %p281 = scmp.eq.s32.totalorder %s23, 0
      %p282 = scmp.eq.s32.totalorder %s24, 0
      %p283 = pnand %p281, %p282
      %p284 = pneg %p283
      // Predicated region
      $region41: #{bottleneck_with_intermediates.2} parent=39 // pred_check
        _
      $region42: #{bottleneck_with_intermediates.2} parent=39 // pred_check_branch
        %286 = sbr.rel (%p283) target = $region44
      $region43: #{bottleneck_with_intermediates.2} parent=39 // pred_region
        %287 = vst [vmem:[#allocation2] sm:$0x1] 0.0
        %288 = vst [vmem:[#allocation3] sm:$0x1] 0.0
      $region44: #{bottleneck_with_intermediates.2} parent=39 // pred_fallthru
        _
      // Predicated region
      $region45: #{bottleneck_with_intermediates.2} parent=39 // pred_check
        %p289 = pneg %p281
      $region46: #{bottleneck_with_intermediates.2} parent=39 // pred_check_branch
        %291 = sbr.rel (%p289) target = $region48
      $region47: #{bottleneck_with_intermediates.2} parent=39 // pred_region
        %v292 = vld [vmem:[%s275] sm:$0x1]
        %v293 = vld [vmem:[#allocation2] sm:$0x1]
        %v294 = vadd.f32 %v292, 0.0
        %v295 = vadd.f32 %v293, %v294
        %296 = vst [vmem:[#allocation2] sm:$0x1] %v295
        %v297 = vld [vmem:[#allocation3] sm:$0x1]
        %v298 = vmul.f32 %v292, %v292
        %v299 = vadd.f32 %v298, 0.0
        %v300 = vadd.f32 %v297, %v299
        %301 = vst [vmem:[#allocation3] sm:$0x1] %v300
      $region48: #{bottleneck_with_intermediates.2} parent=39 // pred_fallthru
        _
      %p302 = scmp.eq.s32.totalorder %s23, 1
      %p303 = pnand %p302, %p282
      %p304 = pneg %p303
      // Predicated region
      $region49: #{bottleneck_with_intermediates.2} parent=39 // pred_check
        _
      $region50: #{bottleneck_with_intermediates.2} parent=39 // pred_check_branch
        %306 = sbr.rel (%p303) target = $region52
      $region51: #{bottleneck_with_intermediates.2} parent=39 // pred_region
        %v307 = vld [vmem:[%s3] sm:$0xff]
        %v308 = vld [vmem:[%s3 + $0x8] sm:$0xff]
        %v309 = vld [vmem:[%s3 + $0x10] sm:$0xff]
        %v310 = vld [vmem:[%s3 + $0x18] sm:$0xff]
        %v311 = vld [vmem:[%s3 + $0x20] sm:$0xff]
        %v312 = vld [vmem:[%s3 + $0x28] sm:$0xff]
        %v313 = vld [vmem:[%s3 + $0x30] sm:$0xff]
        %v314 = vld [vmem:[%s3 + $0x38] sm:$0xff]
        %v315 = vld [vmem:[%s3 + $0x40] sm:$0xff]
        %v316 = vld [vmem:[%s3 + $0x48] sm:$0xff]
        %v317 = vld [vmem:[%s3 + $0x50] sm:$0xff]
        %v318 = vld [vmem:[%s3 + $0x58] sm:$0xff]
        %v319 = vld [vmem:[%s3 + $0x60] sm:$0xff]
        %v320 = vld [vmem:[%s3 + $0x68] sm:$0xff]
        %v321 = vld [vmem:[%s3 + $0x70] sm:$0xff]
        %v322 = vld [vmem:[%s3 + $0x78] sm:$0xff]
        %v323 = vld [vmem:[#allocation2] sm:$0x1]
        %324 = vmatpush.msra.mxu0 %v322
        %325 = vmatpush.msra.mxu0 %v321
        %326 = vmatpush.msra.mxu0 %v320
        %327 = vmatpush.msra.mxu0 %v319
        %328 = vmatpush.msra.mxu0 %v318
        %329 = vmatpush.msra.mxu0 %v317
        %330 = vmatpush.msra.mxu0 %v316
        %331 = vmatpush.msra.mxu0 %v315
        %332 = vmatpush.msra.mxu0 %v314
        %333 = vmatpush.msra.mxu0 %v313
        %334 = vmatpush.msra.mxu0 %v312
        %335 = vmatpush.msra.mxu0 %v311
        %336 = vmatpush.msra.mxu0 %v310
        %337 = vmatpush.msra.mxu0 %v309
        %338 = vmatpush.msra.mxu0 %v308
        %339 = vmatpush.msra.mxu0 %v307
        %340 = vmatmul.f32.gmra.mxu0 %v323
        %v341 = vpop.f32.mrf.mxu0
        %v342 = vadd.f32 0.0, %v341
        %343 = vdwg.mxu0
        %v344 = vld [vmem:[#allocation3] sm:$0x1]
        %345 = vmatpush.msra.mxu0 %v322
        %346 = vmatpush.msra.mxu0 %v321
        %347 = vmatpush.msra.mxu0 %v320
        %348 = vmatpush.msra.mxu0 %v319
        %349 = vmatpush.msra.mxu0 %v318
        %350 = vmatpush.msra.mxu0 %v317
        %351 = vmatpush.msra.mxu0 %v316
        %352 = vmatpush.msra.mxu0 %v315
        %353 = vmatpush.msra.mxu0 %v314
        %354 = vmatpush.msra.mxu0 %v313
        %355 = vmatpush.msra.mxu0 %v312
        %356 = vmatpush.msra.mxu0 %v311
        %357 = vmatpush.msra.mxu0 %v310
        %358 = vmatpush.msra.mxu0 %v309
        %359 = vmatpush.msra.mxu0 %v308
        %360 = vmatpush.msra.mxu0 %v307
        %361 = vmatmul.f32.gmra.mxu0 %v344
        %v362 = vpop.f32.mrf.mxu0
        %v363 = vadd.f32 0.0, %v362
        %364 = vdwg.mxu0
        %v365 = vmul.f32 %v342, 0.03125
        %v366 = vmul.f32 %v363, 0.03125
        %v367 = vmul.f32 %v365, %v365
        %v368 = vsub.f32 %v366, %v367
        %v369 = vmax.f32 %v368, 0.0
        %v370 = vld [vmem:[%s1] sm:$0x1]
        %v371 = vadd.f32 %v369, 1e-05
        %v372 = vrsqrt.pop %v371
        %v373 = vmul.f32 %v372, %v371
        %v374 = vmul.f32 %v373, %v372
        %v375 = vmul.f32 0.5, %v374
        %v376 = vsub.f32 1.5, %v375
        %v377 = vmul.f32 %v372, %v376
        %vm378 = vweird.f32 %v371
        %vm379 = vweird.f32 %v372
        %vm380 = vmor %vm378, %vm379
        %v381 = vsel %vm380, %v372, %v377
        %v382 = vmul.f32 %v370, %v381
        %383 = vst [vmem:[#allocation4] sm:$0x1] %v382
        %v384 = vld [vmem:[%s2] sm:$0x1]
        %v385 = vmul.f32 %v365, %v382
        %v386 = vsub.f32 %v384, %v385
        %387 = vst [vmem:[#allocation5] sm:$0x1] %v386
        %388 = vst [vmem:[%s6] sm:$0x1] 0.0
        %389 = vst [vmem:[%s7] sm:$0x1] 0.0
      $region52: #{bottleneck_with_intermediates.2} parent=39 // pred_fallthru
        _
      // Predicated region
      $region53: #{bottleneck_with_intermediates.2} parent=39 // pred_check
        %p390 = pneg %p302
      $region54: #{bottleneck_with_intermediates.2} parent=39 // pred_check_branch
        %392 = sbr.rel (%p390) target = $region56
      $region55: #{bottleneck_with_intermediates.2} parent=39 // pred_region
        %v393 = vld [vmem:[%s275] sm:$0x1]
        %v394 = vld [vmem:[#allocation4] sm:$0x1]
        %v395 = vmul.f32 %v393, %v394
        %v396 = vld [vmem:[#allocation5] sm:$0x1]
        %v397 = vadd.f32 %v395, %v396
        %v398 = vld [vmem:[%s4] sm:$0xff]
        %v399 = vld [vmem:[%s4 + $0x8] sm:$0xff]
        %v400 = vld [vmem:[%s4 + $0x10] sm:$0xff]
        %v401 = vld [vmem:[%s4 + $0x18] sm:$0xff]
        %v402 = vld [vmem:[%s4 + $0x20] sm:$0xff]
        %v403 = vld [vmem:[%s4 + $0x28] sm:$0xff]
        %v404 = vld [vmem:[%s4 + $0x30] sm:$0xff]
        %v405 = vld [vmem:[%s4 + $0x38] sm:$0xff]
        %v406 = vld [vmem:[%s4 + $0x40] sm:$0xff]
        %v407 = vld [vmem:[%s4 + $0x48] sm:$0xff]
        %v408 = vld [vmem:[%s4 + $0x50] sm:$0xff]
        %v409 = vld [vmem:[%s4 + $0x58] sm:$0xff]
        %v410 = vld [vmem:[%s4 + $0x60] sm:$0xff]
        %v411 = vld [vmem:[%s4 + $0x68] sm:$0xff]
        %v412 = vld [vmem:[%s4 + $0x70] sm:$0xff]
        %v413 = vld [vmem:[%s4 + $0x78] sm:$0xff]
        %414 = vmatpush.msra.mxu0 %v413
        %415 = vmatpush.msra.mxu0 %v412
        %416 = vmatpush.msra.mxu0 %v411
        %417 = vmatpush.msra.mxu0 %v410
        %418 = vmatpush.msra.mxu0 %v409
        %419 = vmatpush.msra.mxu0 %v408
        %420 = vmatpush.msra.mxu0 %v407
        %421 = vmatpush.msra.mxu0 %v406
        %422 = vmatpush.msra.mxu0 %v405
        %423 = vmatpush.msra.mxu0 %v404
        %424 = vmatpush.msra.mxu0 %v403
        %425 = vmatpush.msra.mxu0 %v402
        %426 = vmatpush.msra.mxu0 %v401
        %427 = vmatpush.msra.mxu0 %v400
        %428 = vmatpush.msra.mxu0 %v399
        %429 = vmatpush.msra.mxu0 %v398
        %430 = vmatmul.f32.gmra.mxu0 %v397
        %v431 = vpop.f32.mrf.mxu0
        %v432 = vadd.f32 0.0, %v431
        %433 = vdwg.mxu0
        %v434 = vmul.f32 %v432, 0.5
        %v435 = vmul.f32 %v432, 0.70710677
        %v436 = vmul.f32 %v435, %v435
        %v437 = vmin.f32 16.0, %v436
        %v438 = vmul.f32 %v437, 2.1237322e-06
        %v439 = vadd.f32 %v438, 0.00028619796
        %v440 = vmul.f32 %v437, %v439
        %v441 = vadd.f32 %v440, 0.0036580483
        %v442 = vmul.f32 %v437, %v441
        %v443 = vadd.f32 %v442, 0.05243302
        %v444 = vmul.f32 %v437, %v443
        %v445 = vadd.f32 %v444, 0.18741608
        %v446 = vmul.f32 %v437, %v445
        %v447 = vadd.f32 %v446, 1.1283791
        %v448 = vmul.f32 %v435, %v447
        %v449 = vmul.f32 %v437, 3.8918573e-05
        %v450 = vadd.f32 %v449, 0.001143296
        %v451 = vmul.f32 %v437, %v450
        %v452 = vadd.f32 %v451, 0.014752088
        %v453 = vmul.f32 %v437, %v452
        %v454 = vadd.f32 %v453, 0.112945676
        %v455 = vmul.f32 %v437, %v454
        %v456 = vadd.f32 %v455, 0.4994258
        %v457 = vmul.f32 %v437, %v456
        %v458 = vadd.f32 %v457, 1.0
        %v459 = vrcp.pop %v458
        %v460 = vmul.f32 %v458, %v459
        %v461 = vsub.f32 1.0, %v460
        %v462 = vmul.f32 %v459, %v461
        %v463 = vadd.f32 %v459, %v462
        %vm464 = vweird.f32 %v458
        %vm465 = vweird.f32 %v459
        %vm466 = vmor %vm464, %vm465
        %v467 = vsel %vm466, %v459, %v463
        %v468 = vand.u32 2147483647, %v458
        %vm469 = vcmp.eq.f32.partialorder %v468, 8.507059e+37
        %v470 = vand.u32 %v458, 2147483648
        %v471 = vor.u32 1.1754944e-38, %v470
        %v472 = vsel %vm469, %v471, %v467
        %v473 = vmul.f32 %v448, %v472
        %v474 = vmin.f32 %v473, 1.0
        %v475 = vmax.f32 %v474, -1.0
        %v476 = vadd.f32 %v475, 1.0
        %v477 = vmul.f32 %v434, %v476
        %478 = vst [vmem:[%s279] sm:$0x1] %v477
        %v479 = vld [vmem:[%s6] sm:$0x1]
        %v480 = vadd.f32 %v477, 0.0
        %v481 = vadd.f32 %v479, %v480
        %482 = vst [vmem:[%s6] sm:$0x1] %v481
        %v483 = vld [vmem:[%s7] sm:$0x1]
        %v484 = vmul.f32 %v477, %v477
        %v485 = vadd.f32 %v484, 0.0
        %v486 = vadd.f32 %v483, %v485
        %487 = vst [vmem:[%s7] sm:$0x1] %v486
      $region56: #{bottleneck_with_intermediates.2} parent=39 // pred_fallthru
        _
      %s488 = smul.u32 %s24, %s23
      %p489 = scmp.lt.s32.totalorder %s488, 0
      %s490 = scalar_select %p489, %s488, 0
      %s491 = scalar_lea.vmem %s5, %s490
      // Predicated region
      $region57: #{bottleneck_with_intermediates.2} parent=39 // pred_check
        %p492 = pneg %p161
      $region58: #{bottleneck_with_intermediates.2} parent=39 // pred_check_branch
        %494 = sbr.rel (%p492) target = $region60
      $region59: #{bottleneck_with_intermediates.2} parent=39 // pred_region
        %s495 = smul.u32 %s24, %s23
      $region60: #{bottleneck_with_intermediates.2} parent=39 // pred_fallthru
        _
      // Predicated region
      $region61: #{bottleneck_with_intermediates.2} parent=39 // pred_check
        %p496 = pneg %p182
      $region62: #{bottleneck_with_intermediates.2} parent=39 // pred_check_branch
        %498 = sbr.rel (%p496) target = $region64
      $region63: #{bottleneck_with_intermediates.2} parent=39 // pred_region
        _
      $region64: #{bottleneck_with_intermediates.2} parent=39 // pred_fallthru
        _
      // Predicated region
      $region65: #{bottleneck_with_intermediates.2} parent=39 // pred_check
        %p499 = pneg %p203
      $region66: #{bottleneck_with_intermediates.2} parent=39 // pred_check_branch
        %501 = sbr.rel (%p499) target = $region68
      $region67: #{bottleneck_with_intermediates.2} parent=39 // pred_region
        _
      $region68: #{bottleneck_with_intermediates.2} parent=39 // pred_fallthru
        _
      // Predicated region
      $region69: #{bottleneck_with_intermediates.2} parent=39 // pred_check
        %p502 = pneg %p182
      $region70: #{bottleneck_with_intermediates.2} parent=39 // pred_check_branch
        %504 = sbr.rel (%p502) target = $region72
      $region71: #{bottleneck_with_intermediates.2} parent=39 // pred_region
        _
      $region72: #{bottleneck_with_intermediates.2} parent=39 // pred_fallthru
        _
      // Predicated region
      $region73: #{bottleneck_with_intermediates.2} parent=39 // pred_check
        %p505 = pneg %p203
      $region74: #{bottleneck_with_intermediates.2} parent=39 // pred_check_branch
        %507 = sbr.rel (%p505) target = $region76
      $region75: #{bottleneck_with_intermediates.2} parent=39 // pred_region
        _
      $region76: #{bottleneck_with_intermediates.2} parent=39 // pred_fallthru
        _
    $region40: #{bottleneck_with_intermediates.2} parent=5 // pred_fallthru
      _
    %p508 = scmp.le.s32.totalorder 2, %s14
    // Predicated region
    $region77: #{bottleneck_with_intermediates.2} parent=5 // pred_check
      %p509 = pneg %p508
    $region78: #{bottleneck_with_intermediates.2} parent=5 // pred_check_branch
      %511 = sbr.rel (%p509) target = $region80
    $region79: #{bottleneck_with_intermediates.2} parent=5 // pred_region
      %s512 = ssub.s32 %s14, 2
      // Predicated region
      $region81: #{bottleneck_with_intermediates.2} parent=79 // pred_check
        %p513 = pneg %p167
      $region82: #{bottleneck_with_intermediates.2} parent=79 // pred_check_branch
        %515 = sbr.rel (%p513) target = $region84
      $region83: #{bottleneck_with_intermediates.2} parent=79 // pred_region
        %s516 = smul.u32 %s26, %s25
        %p517 = scmp.lt.s32.totalorder %s516, 0
        %s518 = scalar_select %p517, %s516, 0
        %s519 = scalar_lea.vmem %s5, %s518
      $region84: #{bottleneck_with_intermediates.2} parent=79 // pred_fallthru
        _
    $region80: #{bottleneck_with_intermediates.2} parent=5 // pred_fallthru
      _
  $region6: #{bottleneck_with_intermediates.2} parent=0 // loop_footer
    %s18 = sadd.s32 1, %s14
  $region7: #{bottleneck_with_intermediates.2} parent=0 // loop_footer_branch
    %13 = sbr.rel target = $region3
  $region8: #{bottleneck_with_intermediates.2} parent=0 // loop_exit
    _

// kernel: bottleneck_with_intermediates.3
$region0: #{bottleneck_with_intermediates.3}
  #allocation0 [shape = 'u32[]', space=smem, size = 0x4, offset = 0x4, fixed_abs, tag = 'smem constant byte address 0x4 - core index']
  #allocation1 [shape = 'u32[72,128]{1,0:T(1,128)}', space=vmem, size = 0x9000, scoped, tag = 'internal scratch']
  %s0 = inlined_call_operand.vmem [shape: f32[1,128], index: 0, kind: input, shape index: {}]
  %s1 = inlined_call_operand.vmem [shape: f32[128,128], index: 1, kind: input, shape index: {}]
  %s2 = inlined_call_operand.vmem [shape: f32[1,128], index: 2, kind: input, shape index: {}]
  %s3 = inlined_call_operand.vmem [shape: f32[1,128], index: 3, kind: output, shape index: {}]
  %s4 = sld [smem:[#allocation0]]
  $region22: #{bottleneck_with_intermediates.3} parent=0
    _
  %s6 = ssub.s32 1, %s4
  %s7 = scalar_select 0, %s6, %s4
  // Predicated region
  $region2: #{bottleneck_with_intermediates.3} parent=0 // pred_check
    _
  $region3: #{bottleneck_with_intermediates.3} parent=0 // pred_check_branch
    %9 = sbr.rel (0) target = $region5
  $region4: #{bottleneck_with_intermediates.3} parent=0 // pred_region
    _
  $region5: #{bottleneck_with_intermediates.3} parent=0 // pred_fallthru
    _
  // Predicated region
  $region6: #{bottleneck_with_intermediates.3} parent=0 // pred_check
    _
  $region7: #{bottleneck_with_intermediates.3} parent=0 // pred_check_branch
    %11 = sbr.rel (0) target = $region9
  $region8: #{bottleneck_with_intermediates.3} parent=0 // pred_region
    _
  $region9: #{bottleneck_with_intermediates.3} parent=0 // pred_fallthru
    _
  // Predicated region
  $region10: #{bottleneck_with_intermediates.3} parent=0 // pred_check
    _
  $region11: #{bottleneck_with_intermediates.3} parent=0 // pred_check_branch
    %13 = sbr.rel (0) target = $region13
  $region12: #{bottleneck_with_intermediates.3} parent=0 // pred_region
    _
  $region13: #{bottleneck_with_intermediates.3} parent=0 // pred_fallthru
    _
  %v14 = vld [vmem:[%s0] sm:$0x1]
  %v15 = vld [vmem:[%s1] sm:$0xff]
  %v16 = vld [vmem:[%s1 + $0x8] sm:$0xff]
  %v17 = vld [vmem:[%s1 + $0x10] sm:$0xff]
  %v18 = vld [vmem:[%s1 + $0x18] sm:$0xff]
  %v19 = vld [vmem:[%s1 + $0x20] sm:$0xff]
  %v20 = vld [vmem:[%s1 + $0x28] sm:$0xff]
  %v21 = vld [vmem:[%s1 + $0x30] sm:$0xff]
  %v22 = vld [vmem:[%s1 + $0x38] sm:$0xff]
  %v23 = vld [vmem:[%s1 + $0x40] sm:$0xff]
  %v24 = vld [vmem:[%s1 + $0x48] sm:$0xff]
  %v25 = vld [vmem:[%s1 + $0x50] sm:$0xff]
  %v26 = vld [vmem:[%s1 + $0x58] sm:$0xff]
  %v27 = vld [vmem:[%s1 + $0x60] sm:$0xff]
  %v28 = vld [vmem:[%s1 + $0x68] sm:$0xff]
  %v29 = vld [vmem:[%s1 + $0x70] sm:$0xff]
  %v30 = vld [vmem:[%s1 + $0x78] sm:$0xff]
  %v31 = vld [vmem:[%s2] sm:$0x1]
  %32 = vmatpush.msra.mxu0 %v30
  %33 = vmatpush.msra.mxu0 %v29
  %34 = vmatpush.msra.mxu0 %v28
  %35 = vmatpush.msra.mxu0 %v27
  %36 = vmatpush.msra.mxu0 %v26
  %37 = vmatpush.msra.mxu0 %v25
  %38 = vmatpush.msra.mxu0 %v24
  %39 = vmatpush.msra.mxu0 %v23
  %40 = vmatpush.msra.mxu0 %v22
  %41 = vmatpush.msra.mxu0 %v21
  %42 = vmatpush.msra.mxu0 %v20
  %43 = vmatpush.msra.mxu0 %v19
  %44 = vmatpush.msra.mxu0 %v18
  %45 = vmatpush.msra.mxu0 %v17
  %46 = vmatpush.msra.mxu0 %v16
  %47 = vmatpush.msra.mxu0 %v15
  %48 = vmatmul.f32.gmra.mxu0 %v14
  %v49 = vpop.f32.mrf.mxu0
  %v50 = vadd.f32 %v31, %v49
  %51 = vdwg.mxu0
  %v52 = vmul.f32 %v50, 0.5
  %v53 = vmul.f32 %v50, 0.70710677
  %v54 = vmul.f32 %v53, %v53
  %v55 = vmin.f32 16.0, %v54
  %v56 = vmul.f32 %v55, 2.1237322e-06
  %v57 = vadd.f32 %v56, 0.00028619796
  %v58 = vmul.f32 %v55, %v57
  %v59 = vadd.f32 %v58, 0.0036580483
  %v60 = vmul.f32 %v55, %v59
  %v61 = vadd.f32 %v60, 0.05243302
  %v62 = vmul.f32 %v55, %v61
  %v63 = vadd.f32 %v62, 0.18741608
  %v64 = vmul.f32 %v55, %v63
  %v65 = vadd.f32 %v64, 1.1283791
  %v66 = vmul.f32 %v53, %v65
  %v67 = vmul.f32 %v55, 3.8918573e-05
  %v68 = vadd.f32 %v67, 0.001143296
  %v69 = vmul.f32 %v55, %v68
  %v70 = vadd.f32 %v69, 0.014752088
  %v71 = vmul.f32 %v55, %v70
  %v72 = vadd.f32 %v71, 0.112945676
  %v73 = vmul.f32 %v55, %v72
  %v74 = vadd.f32 %v73, 0.4994258
  %v75 = vmul.f32 %v55, %v74
  %v76 = vadd.f32 %v75, 1.0
  %v77 = vrcp.pop %v76
  %v78 = vmul.f32 %v76, %v77
  %v79 = vsub.f32 1.0, %v78
  %v80 = vmul.f32 %v77, %v79
  %v81 = vadd.f32 %v77, %v80
  %vm82 = vweird.f32 %v76
  %vm83 = vweird.f32 %v77
  %vm84 = vmor %vm82, %vm83
  %v85 = vsel %vm84, %v77, %v81
  %v86 = vand.u32 2147483647, %v76
  %vm87 = vcmp.eq.f32.partialorder %v86, 8.507059e+37
  %v88 = vand.u32 %v76, 2147483648
  %v89 = vor.u32 1.1754944e-38, %v88
  %v90 = vsel %vm87, %v89, %v85
  %v91 = vmul.f32 %v66, %v90
  %v92 = vmin.f32 %v91, 1.0
  %v93 = vmax.f32 %v92, -1.0
  %v94 = vadd.f32 %v93, 1.0
  %v95 = vmul.f32 %v52, %v94
  %96 = vst [vmem:[%s3] sm:$0x1] %v95
  // Predicated region
  $region14: #{bottleneck_with_intermediates.3} parent=0 // pred_check
    _
  $region15: #{bottleneck_with_intermediates.3} parent=0 // pred_check_branch
    %98 = sbr.rel (0) target = $region17
  $region16: #{bottleneck_with_intermediates.3} parent=0 // pred_region
    _
  $region17: #{bottleneck_with_intermediates.3} parent=0 // pred_fallthru
    _
  // Predicated region
  $region18: #{bottleneck_with_intermediates.3} parent=0 // pred_check
    _
  $region19: #{bottleneck_with_intermediates.3} parent=0 // pred_check_branch
    %100 = sbr.rel (0) target = $region21
  $region20: #{bottleneck_with_intermediates.3} parent=0 // pred_region
    _
  $region21: #{bottleneck_with_intermediates.3} parent=0 // pred_fallthru
    _

</llo_original>
